<compile_context>
chip_gen: v6e
topology: v6e:2x2x1
jax: 0.10.0
libtpu: 0.0.40
codegen_flags: <defaults>
</compile_context>

<pallas_src>
import math
import jax
import jax.numpy as jnp
from jax.experimental import pallas as pl
from jax.experimental.pallas import tpu as pltpu


def _round_up(a: int, b: int) -> int:
    return ((a + b - 1) // b) * b


# ----------------------------- Pallas kernel ------------------------------ #
def make_mlp_kernel(num_layers: int, mxu_dtype):
    """kernel(x_ref, w0_ref, ..., w{L-1}_ref, out_ref).

    x_ref   : (batch_tile, d_in)   natural layout, batch on the sublane axis
    wl_ref  : (h_in, h_out)        pre-normalized effective weight (mxu_dtype)
    out_ref : (batch_tile, d_out)
    """

    def kernel(*refs):
        x_ref = refs[0]
        w_refs = refs[1:1 + num_layers]
        o_ref = refs[1 + num_layers]

        h = x_ref[...]                                          # (bt, d_in), HBM I/O dtype
        for l in range(num_layers):                             # static unroll
            w = w_refs[l][...]                                  # (h_in, h_out), already mxu_dtype
            # cast only at the MXU input (no-op when h is already bf16); f32 accumulation
            h = jnp.dot(h.astype(mxu_dtype), w,
                        preferred_element_type=jnp.float32)     # (bt, h_out) f32
            if l < num_layers - 1:
                h = h * jax.nn.sigmoid(h)                       # silu in f32 (v5e-safe)
        o_ref[...] = h.astype(o_ref.dtype)

    return kernel


# -------------------- grid-invariant weight preparation -------------------- #
def effective_weights(weights_v, weights_g, mxu_dtype):
    """W_l = w_g * w_v / ||w_v||_row (torch._weight_norm, dim=0 on (h_in,h_out)).

    The module stores its weight as (h_in, h_out) (not nn.Linear's (out,in)), so
    norm_except_dim(w_v, 2, dim=0) is the per-row L2 norm over h_out, shape
    (h_in, 1). Hoisted out of the grid loop: recomputing the reduce+rsqrt per
    batch tile would be pure waste since it never changes.
    """
    out = []
    for w_v, w_g in zip(weights_v, weights_g):
        w_v32 = w_v.astype(jnp.float32)
        inv_norm = jax.lax.rsqrt(jnp.sum(w_v32 * w_v32, axis=1, keepdims=True))
        w = (w_g.astype(jnp.float32) * inv_norm) * w_v32        # (h_in, h_out)
        out.append(w.astype(mxu_dtype))
    return out


# ------------------------------ JAX wrapper -------------------------------- #
def scalar_mlp_forward(x, weights_v, weights_g, *, batch_tile=2048, use_bf16=True,
                       vmem_limit_bytes=None):
    """x: (N, in_features). weights_v[l]: (h_in, h_out), weights_g[l]: (h_in, 1).

    Output: (N, out_features), same dtype as x. Pass bf16 x for bf16 HBM I/O.
    """
    N, d_in = x.shape
    num_layers = len(weights_v)
    d_out = weights_v[-1].shape[1]
    mxu_dtype = jnp.bfloat16 if use_bf16 else jnp.float32

    w_eff = effective_weights(weights_v, weights_g, mxu_dtype)

    # Tile the batch (sublane) axis; the feature (lane) axis is always the full
    # array dim, so no 128-divisibility constraint applies there. Ragged N is
    # padded up to a multiple of the tile and sliced back afterwards.
    bt = max(8, min(int(batch_tile), _round_up(N, 8)))
    bt = _round_up(bt, 8)
    n_pad = _round_up(N, bt)
    x_in = jnp.pad(x, ((0, n_pad - N), (0, 0))) if n_pad != N else x

    grid = (n_pad // bt,)

    in_specs = [pl.BlockSpec((bt, d_in), lambda i: (i, 0))]
    args = [x_in]
    for w in w_eff:
        # whole (KB-sized) weight resident in VMEM; constant block index -> no re-DMA
        in_specs.append(pl.BlockSpec(w.shape, lambda i: (0, 0)))
        args.append(w)
    out_specs = pl.BlockSpec((bt, d_out), lambda i: (i, 0))

    cp_kwargs = dict(dimension_semantics=("parallel",))
    if vmem_limit_bytes is not None:
        cp_kwargs["vmem_limit_bytes"] = vmem_limit_bytes

    out = pl.pallas_call(
        make_mlp_kernel(num_layers, mxu_dtype),
        out_shape=jax.ShapeDtypeStruct((n_pad, d_out), x.dtype),
        grid_spec=pltpu.PrefetchScalarGridSpec(
            num_scalar_prefetch=0,
            grid=grid,
            in_specs=in_specs,
            out_specs=out_specs,
        ),
        compiler_params=pltpu.CompilerParams(**cp_kwargs),
    )(*args)

    return out[:N] if n_pad != N else out


# --------------------------- deterministic init ---------------------------- #
def init_scalar_mlp_params(key, dimensions, nonlin_const):
    """Mirrors ScalarMLPFunction.__init__ (weight_norm=True, has_bias=False)."""
    num_layers = len(dimensions) - 1
    weights_v, weights_g = [], []
    norm_from_last = 1.0
    for layer, (h_in, h_out) in enumerate(zip(dimensions[:-1], dimensions[1:])):
        key, sub = jax.random.split(key)
        w_v = jax.random.normal(sub, (h_in, h_out), dtype=jnp.float32)
        w_v = w_v * (norm_from_last / math.sqrt(float(h_in)))
        # w_g = norm_except_dim(w_v, 2, dim=0) -> per-row L2 norm, shape (h_in, 1)
        w_g = jnp.sqrt(jnp.sum(w_v * w_v, axis=1, keepdims=True))
        weights_v.append(w_v)
        weights_g.append(w_g)
        if layer < num_layers - 1:          # silu applied -> rescale next layer init
            norm_from_last = nonlin_const
    return weights_v, weights_g


def normalize2mom_cst_silu(key):
    """normalize2mom(silu).cst: 1 / sqrt(E[silu(z)^2]), z ~ N(0,1) (sampled)."""
    z = jax.random.normal(key, (1_000_000,), dtype=jnp.float32)
    s = z * jax.nn.sigmoid(z)
    return float(1.0 / jnp.sqrt(jnp.mean(s * s)))


# ------------------------------- references -------------------------------- #
def reference_forward_f32(x, weights_v, weights_g):
    """Pure-f32 transcription of the torch module math."""
    h = x.astype(jnp.float32)
    num_layers = len(weights_v)
    for l, (w_v, w_g) in enumerate(zip(weights_v, weights_g)):
        row_norm = jnp.sqrt(jnp.sum(w_v * w_v, axis=1, keepdims=True))
        h = h @ (w_g * (w_v / row_norm))
        if l < num_layers - 1:
            h = h * jax.nn.sigmoid(h)
    return h


def reference_forward_mixed(x, weights_v, weights_g, use_bf16=True):
    """Pure-JAX mirror of the kernel's exact dtype policy."""
    mxu_dtype = jnp.bfloat16 if use_bf16 else jnp.float32
    w_eff = effective_weights(weights_v, weights_g, mxu_dtype)
    h = x
    num_layers = len(w_eff)
    for l, w in enumerate(w_eff):
        h = jnp.dot(h.astype(mxu_dtype), w, preferred_element_type=jnp.float32)
        if l < num_layers - 1:
            h = h * jax.nn.sigmoid(h)
    return h.astype(x.dtype)


if __name__ == "__main__":
    key = jax.random.PRNGKey(0)
    k_x, k_w, k_c, k_g, k_x2 = jax.random.split(key, 5)

    # ScalarMLPFunction(mlp_input_dimension=16, mlp_latent_dimensions=[32, 32],
    #                   mlp_output_dimension=8, mlp_nonlinearity='silu',
    #                   weight_norm=True, dim=0, has_bias=False)
    dimensions = [16, 32, 32, 8]

    cst = normalize2mom_cst_silu(k_c)          # ~1.679 (silu 2nd-moment normalizer)
    weights_v, weights_g = init_scalar_mlp_params(k_w, dimensions, cst)
    # Perturb the gains so the weight-norm path (w_g != ||w_v||) is exercised.
    gkeys = jax.random.split(k_g, len(weights_g))
    weights_g = [g * jax.random.uniform(gkeys[i], g.shape, minval=0.5, maxval=1.5)
                 for i, g in enumerate(weights_g)]

    # Small smoke-test shapes. batch_tile=256 -> grid = 8: even and >= 8, so both
    # v7x TensorCores get >= 4 pipelined steps. (Production default bt=2048 with
    # N >= ~1e5 is where the tile sweep matters; this demo is a correctness run.)
    N, batch_tile = 2048, 256
    x = jax.random.normal(k_x, (N, dimensions[0]), dtype=jnp.bfloat16)   # bf16 HBM I/O

    out = scalar_mlp_forward(x, weights_v, weights_g,
                             batch_tile=batch_tile, use_bf16=True)
    out = jax.block_until_ready(out)
    assert out.shape == (N, dimensions[-1])
    assert out.dtype == x.dtype

    # Tight check vs a reference that mirrors the kernel's dtype policy.
    ref_mixed = reference_forward_mixed(x, weights_v, weights_g, use_bf16=True)
    assert jnp.allclose(out.astype(jnp.float32), ref_mixed.astype(jnp.float32),
                        atol=2e-2, rtol=2e-2)

    # Semantic check vs the full-precision torch-equivalent math (bf16 tolerance).
    ref_f32 = reference_forward_f32(x, weights_v, weights_g)
    assert jnp.allclose(out.astype(jnp.float32), ref_f32,
                        atol=7e-2, rtol=7e-2)

    # Ragged-N tail handling: wrapper pads to the tile internally and slices back.
    N2 = 1000
    x2 = jax.random.normal(k_x2, (N2, dimensions[0]), dtype=jnp.bfloat16)
    out2 = jax.block_until_ready(
        scalar_mlp_forward(x2, weights_v, weights_g,
                           batch_tile=batch_tile, use_bf16=True))
    ref2 = reference_forward_mixed(x2, weights_v, weights_g, use_bf16=True)
    assert out2.shape == (N2, dimensions[-1])
    assert jnp.allclose(out2.astype(jnp.float32), ref2.astype(jnp.float32),
                        atol=2e-2, rtol=2e-2)

    print("KERNEL_OK")
</pallas_src>

<mosaic_0001>
module attributes {stable_mosaic.version = 11 : i64} {
  func.func @kernel(%arg0: i32, %arg1: memref<256x16xbf16, #tpu.memory_space<vmem>>, %arg2: memref<16x32xbf16, #tpu.memory_space<vmem>>, %arg3: memref<32x32xbf16, #tpu.memory_space<vmem>>, %arg4: memref<32x8xbf16, #tpu.memory_space<vmem>>, %arg5: memref<256x8xbf16, #tpu.memory_space<vmem>>) attributes {dimension_semantics = [#tpu.dimension_semantics<parallel>], iteration_bounds = array<i64: 8>, scalar_prefetch = 0 : i64, scratch_operands = 0 : i64, tpu.core_type = #tpu.core_type<tc>, window_params = [{transform_indices = @transform_0, window_bounds = array<i64: 256, 16>}, {pipeline_mode = #tpu.pipeline_mode<synchronous>, transform_indices = @transform_1, window_bounds = array<i64: 16, 32>}, {pipeline_mode = #tpu.pipeline_mode<synchronous>, transform_indices = @transform_2, window_bounds = array<i64: 32, 32>}, {pipeline_mode = #tpu.pipeline_mode<synchronous>, transform_indices = @transform_3, window_bounds = array<i64: 32, 8>}, {transform_indices = @transform_4, window_bounds = array<i64: 256, 8>}]} {
    %c0 = arith.constant 0 : index
    %c0_0 = arith.constant 0 : index
    %0 = vector.load %arg1[%c0, %c0_0] : memref<256x16xbf16, #tpu.memory_space<vmem>>, vector<256x16xbf16>
    %c0_1 = arith.constant 0 : index
    %c0_2 = arith.constant 0 : index
    %1 = vector.load %arg2[%c0_1, %c0_2] : memref<16x32xbf16, #tpu.memory_space<vmem>>, vector<16x32xbf16>
    %cst = arith.constant dense<0.000000e+00> : vector<256x32xf32>
    %2 = tpu.matmul %0, %1, %cst {dimension_numbers = #tpu.dot_dimension_numbers<[1], [0], [0], [1], [0, 0, 1, 1], [], []>} : vector<256x16xbf16>, vector<16x32xbf16>, vector<256x32xf32> -> vector<256x32xf32>
    %3 = arith.negf %2 : vector<256x32xf32>
    %4 = math.exp %3 : vector<256x32xf32>
    %cst_3 = arith.constant 1.000000e+00 : f32
    %5 = vector.broadcast %cst_3 : f32 to vector<256x32xf32>
    %6 = arith.addf %5, %4 : vector<256x32xf32>
    %7 = arith.divf %5, %6 : vector<256x32xf32>
    %8 = arith.mulf %2, %7 : vector<256x32xf32>
    %c0_4 = arith.constant 0 : index
    %c0_5 = arith.constant 0 : index
    %9 = vector.load %arg3[%c0_4, %c0_5] : memref<32x32xbf16, #tpu.memory_space<vmem>>, vector<32x32xbf16>
    %10 = arith.truncf %8 : vector<256x32xf32> to vector<256x32xbf16>
    %cst_6 = arith.constant dense<0.000000e+00> : vector<256x32xf32>
    %11 = tpu.matmul %10, %9, %cst_6 {dimension_numbers = #tpu.dot_dimension_numbers<[1], [0], [0], [1], [0, 0, 1, 1], [], []>} : vector<256x32xbf16>, vector<32x32xbf16>, vector<256x32xf32> -> vector<256x32xf32>
    %12 = arith.negf %11 : vector<256x32xf32>
    %13 = math.exp %12 : vector<256x32xf32>
    %cst_7 = arith.constant 1.000000e+00 : f32
    %14 = vector.broadcast %cst_7 : f32 to vector<256x32xf32>
    %15 = arith.addf %14, %13 : vector<256x32xf32>
    %16 = arith.divf %14, %15 : vector<256x32xf32>
    %17 = arith.mulf %11, %16 : vector<256x32xf32>
    %c0_8 = arith.constant 0 : index
    %c0_9 = arith.constant 0 : index
    %18 = vector.load %arg4[%c0_8, %c0_9] : memref<32x8xbf16, #tpu.memory_space<vmem>>, vector<32x8xbf16>
    %19 = arith.truncf %17 : vector<256x32xf32> to vector<256x32xbf16>
    %cst_10 = arith.constant dense<0.000000e+00> : vector<256x8xf32>
    %20 = tpu.matmul %19, %18, %cst_10 {dimension_numbers = #tpu.dot_dimension_numbers<[1], [0], [0], [1], [0, 0, 1, 1], [], []>} : vector<256x32xbf16>, vector<32x8xbf16>, vector<256x8xf32> -> vector<256x8xf32>
    %21 = arith.truncf %20 : vector<256x8xf32> to vector<256x8xbf16>
    %c0_11 = arith.constant 0 : index
    %c0_12 = arith.constant 0 : index
    %22 = vector.load %arg5[%c0_11, %c0_12] : memref<256x8xbf16, #tpu.memory_space<vmem>>, vector<256x8xbf16>
    tpu.vector_store %arg5[%c0_11, %c0_12], %21 {strides = array<i32>} : memref<256x8xbf16, #tpu.memory_space<vmem>>, vector<256x8xbf16>,
    return
  }
  func.func @transform_0(%arg0: i32) -> (i32, i32) {
    %c0_i32 = arith.constant 0 : i32
    %c0_i32_0 = arith.constant 0 : i32
    return %arg0, %c0_i32 : i32, i32
  }
  func.func @transform_1(%arg0: i32) -> (i32, i32) {
    %c0_i32 = arith.constant 0 : i32
    %c0_i32_0 = arith.constant 0 : i32
    %c0_i32_1 = arith.constant 0 : i32
    return %c0_i32, %c0_i32_0 : i32, i32
  }
  func.func @transform_2(%arg0: i32) -> (i32, i32) {
    %c0_i32 = arith.constant 0 : i32
    %c0_i32_0 = arith.constant 0 : i32
    %c0_i32_1 = arith.constant 0 : i32
    return %c0_i32, %c0_i32_0 : i32, i32
  }
  func.func @transform_3(%arg0: i32) -> (i32, i32) {
    %c0_i32 = arith.constant 0 : i32
    %c0_i32_0 = arith.constant 0 : i32
    %c0_i32_1 = arith.constant 0 : i32
    return %c0_i32, %c0_i32_0 : i32, i32
  }
  func.func @transform_4(%arg0: i32) -> (i32, i32) {
    %c0_i32 = arith.constant 0 : i32
    %c0_i32_0 = arith.constant 0 : i32
    return %arg0, %c0_i32 : i32, i32
  }
}

</mosaic_0001>

<llo_original>
// kernel: tpu_custom_call.1
$region0: #{tpu_custom_call.1}
  #allocation0 [shape = 'u32[]', space=smem, size = 0x4, offset = 0x4, fixed_abs, tag = 'smem constant byte address 0x4 - core index']
  #allocation1 [shape = 'u32[144,128]{1,0:T(1,128)}', space=vmem, size = 0x12000, scoped, tag = 'internal scratch']
  %s0 = inlined_call_operand.vmem [shape: bf16[2048,16], index: 0, kind: input, shape index: {}]
  %s1 = inlined_call_operand.vmem [shape: bf16[16,32], index: 1, kind: input, shape index: {}]
  %s2 = inlined_call_operand.vmem [shape: bf16[32,32], index: 2, kind: input, shape index: {}]
  %s3 = inlined_call_operand.vmem [shape: bf16[32,8], index: 3, kind: input, shape index: {}]
  %s4 = inlined_call_operand.vmem [shape: bf16[2048,8], index: 4, kind: output, shape index: {}]
  %s5 = sld [smem:[#allocation0]]
  $region49: #{tpu_custom_call.1} parent=0
    _
  %s7 = ssub.s32 1, %s5
  %s8 = scalar_select 0, %s7, %s5
  loop: start=0, step=1, limit=10
  $region2: #{tpu_custom_call.1} parent=0 // loop_pre_header
    _
  $region3: #{tpu_custom_call.1} parent=0 // loop_header
    %s10 = sphi 0, %s14
    %p11 = scmp.ge.s32.totalorder %s10, 10
    %s20 = sphi 0, %s22
    %s23 = sphi 0, %s20
    %s24 = sphi 0, %s23
    %s40 = sphi 0, %s24
    %s44 = sphi 0, %s44
    %s46 = sphi 0, %s44
    %s47 = sphi 0, %s46
    %s61 = sphi 0, %s47
    %s65 = sphi 0, %s65
    %s67 = sphi 0, %s65
    %s68 = sphi 0, %s67
    %s82 = sphi 0, %s68
    %s86 = sphi 0, %s86
    %s88 = sphi 0, %s86
    %s89 = sphi 0, %s88
    %s103 = sphi 0, %s89
    %s109 = sphi 0, %s111
    %s112 = sphi 0, %s109
    %s113 = sphi 0, %s112
    %s129 = sphi 0, %s113
  $region4: #{tpu_custom_call.1} parent=0 // loop_header_branch
    %13 = sbr.rel (%p11) target = $region8
  $region5: #{tpu_custom_call.1} parent=0 // loop_body
    %s15 = ssub.s32 %s10, 1
    %s16 = ssub.s32 %s10, 2
    %s17 = sadd.s32 %s10, 1
    %s18 = ssub.s32 %s10, %s17
    %p19 = scmp.eq.s32.totalorder %s18, 0
    %s21 = sadd.s32 %s20, 1
    %s22 = scalar_select %p19, %s20, %s21
    %p25 = pneg %p19
    %p26 = scmp.eq.s32.totalorder %s10, 7
    %p27 = por %p25, %p26
    %p28 = scmp.ne.s32.totalorder %s20, %s23
    %p29 = scmp.eq.s32.totalorder %s10, 0
    %p30 = por %p28, %p29
    %p31 = scmp.ne.s32.totalorder %s20, %s23
    %p32 = scmp.eq.s32.totalorder %s15, 7
    %p33 = por %p31, %p32
    %p34 = scmp.ne.s32.totalorder %s23, %s24
    %p35 = scmp.eq.s32.totalorder %s15, 0
    %p36 = por %p34, %p35
    %p37 = scmp.ne.s32.totalorder %s23, %s24
    %p38 = scmp.eq.s32.totalorder %s16, 7
    %p39 = por %p37, %p38
    %p41 = scmp.ne.s32.totalorder %s24, %s40
    %p42 = scmp.eq.s32.totalorder %s16, 0
    %p43 = por %p41, %p42
    %s45 = sadd.s32 %s44, 1
    %p48 = scmp.eq.s32.totalorder %s10, 7
    %p49 = scmp.ne.s32.totalorder %s44, %s46
    %p50 = scmp.eq.s32.totalorder %s10, 0
    %p51 = por %p49, %p50
    %p52 = scmp.ne.s32.totalorder %s44, %s46
    %p53 = scmp.eq.s32.totalorder %s15, 7
    %p54 = por %p52, %p53
    %p55 = scmp.ne.s32.totalorder %s46, %s47
    %p56 = scmp.eq.s32.totalorder %s15, 0
    %p57 = por %p55, %p56
    %p58 = scmp.ne.s32.totalorder %s46, %s47
    %p59 = scmp.eq.s32.totalorder %s16, 7
    %p60 = por %p58, %p59
    %p62 = scmp.ne.s32.totalorder %s47, %s61
    %p63 = scmp.eq.s32.totalorder %s16, 0
    %p64 = por %p62, %p63
    %s66 = sadd.s32 %s65, 1
    %p69 = scmp.eq.s32.totalorder %s10, 7
    %p70 = scmp.ne.s32.totalorder %s65, %s67
    %p71 = scmp.eq.s32.totalorder %s10, 0
    %p72 = por %p70, %p71
    %p73 = scmp.ne.s32.totalorder %s65, %s67
    %p74 = scmp.eq.s32.totalorder %s15, 7
    %p75 = por %p73, %p74
    %p76 = scmp.ne.s32.totalorder %s67, %s68
    %p77 = scmp.eq.s32.totalorder %s15, 0
    %p78 = por %p76, %p77
    %p79 = scmp.ne.s32.totalorder %s67, %s68
    %p80 = scmp.eq.s32.totalorder %s16, 7
    %p81 = por %p79, %p80
    %p83 = scmp.ne.s32.totalorder %s68, %s82
    %p84 = scmp.eq.s32.totalorder %s16, 0
    %p85 = por %p83, %p84
    %s87 = sadd.s32 %s86, 1
    %p90 = scmp.eq.s32.totalorder %s10, 7
    %p91 = scmp.ne.s32.totalorder %s86, %s88
    %p92 = scmp.eq.s32.totalorder %s10, 0
    %p93 = por %p91, %p92
    %p94 = scmp.ne.s32.totalorder %s86, %s88
    %p95 = scmp.eq.s32.totalorder %s15, 7
    %p96 = por %p94, %p95
    %p97 = scmp.ne.s32.totalorder %s88, %s89
    %p98 = scmp.eq.s32.totalorder %s15, 0
    %p99 = por %p97, %p98
    %p100 = scmp.ne.s32.totalorder %s88, %s89
    %p101 = scmp.eq.s32.totalorder %s16, 7
    %p102 = por %p100, %p101
    %p104 = scmp.ne.s32.totalorder %s89, %s103
    %p105 = scmp.eq.s32.totalorder %s16, 0
    %p106 = por %p104, %p105
    %s107 = ssub.s32 %s10, %s17
    %p108 = scmp.eq.s32.totalorder %s107, 0
    %s110 = sadd.s32 %s109, 1
    %s111 = scalar_select %p108, %s109, %s110
    %p114 = pneg %p108
    %p115 = scmp.eq.s32.totalorder %s10, 7
    %p116 = por %p114, %p115
    %p117 = scmp.ne.s32.totalorder %s109, %s112
    %p118 = scmp.eq.s32.totalorder %s10, 0
    %p119 = por %p117, %p118
    %p120 = scmp.ne.s32.totalorder %s109, %s112
    %p121 = scmp.eq.s32.totalorder %s15, 7
    %p122 = por %p120, %p121
    %p123 = scmp.ne.s32.totalorder %s112, %s113
    %p124 = scmp.eq.s32.totalorder %s15, 0
    %p125 = por %p123, %p124
    %p126 = scmp.ne.s32.totalorder %s112, %s113
    %p127 = scmp.eq.s32.totalorder %s16, 7
    %p128 = por %p126, %p127
    %p130 = scmp.ne.s32.totalorder %s113, %s129
    %p131 = scmp.eq.s32.totalorder %s16, 0
    %p132 = por %p130, %p131
    %p133 = scmp.le.s32.totalorder 1, %s10
    %p134 = scmp.lt.s32.totalorder %s10, 9
    %p135 = pnand %p133, %p134
    %p136 = pneg %p135
    // Predicated region
    $region9: #{tpu_custom_call.1} parent=5 // pred_check
      _
    $region10: #{tpu_custom_call.1} parent=5 // pred_check_branch
      %138 = sbr.rel (%p135) target = $region12
    $region11: #{tpu_custom_call.1} parent=5 // pred_region
      %s139 = ssub.s32 %s10, 1
      // Predicated region
      $region13: #{tpu_custom_call.1} parent=11 // pred_check
        %p140 = pneg %p57
      $region14: #{tpu_custom_call.1} parent=11 // pred_check_branch
        %142 = sbr.rel (%p140) target = $region16
      $region15: #{tpu_custom_call.1} parent=11 // pred_region
        _
      $region16: #{tpu_custom_call.1} parent=11 // pred_fallthru
        _
      // Predicated region
      $region17: #{tpu_custom_call.1} parent=11 // pred_check
        %p143 = pneg %p78
      $region18: #{tpu_custom_call.1} parent=11 // pred_check_branch
        %145 = sbr.rel (%p143) target = $region20
      $region19: #{tpu_custom_call.1} parent=11 // pred_region
        _
      $region20: #{tpu_custom_call.1} parent=11 // pred_fallthru
        _
      // Predicated region
      $region21: #{tpu_custom_call.1} parent=11 // pred_check
        %p146 = pneg %p99
      $region22: #{tpu_custom_call.1} parent=11 // pred_check_branch
        %148 = sbr.rel (%p146) target = $region24
      $region23: #{tpu_custom_call.1} parent=11 // pred_region
        _
      $region24: #{tpu_custom_call.1} parent=11 // pred_fallthru
        _
    $region12: #{tpu_custom_call.1} parent=5 // pred_fallthru
      _
    %p149 = scmp.lt.s32.totalorder %s10, 8
    // Predicated region
    $region25: #{tpu_custom_call.1} parent=5 // pred_check
      %p150 = pneg %p149
    $region26: #{tpu_custom_call.1} parent=5 // pred_check_branch
      %152 = sbr.rel (%p150) target = $region28
    $region27: #{tpu_custom_call.1} parent=5 // pred_region
      // Predicated region
      $region29: #{tpu_custom_call.1} parent=27 // pred_check
        %p153 = pneg %p30
      $region30: #{tpu_custom_call.1} parent=27 // pred_check_branch
        %155 = sbr.rel (%p153) target = $region32
      $region31: #{tpu_custom_call.1} parent=27 // pred_region
        %s156 = smul.u32 32, %s10
        %p157 = scmp.lt.s32.totalorder %s156, 255
        %s158 = scalar_select %p157, %s156, 255
        %s159 = smul.addr %s158, 4
        %s160 = scalar_lea.vmem %s0, %s159
        %s161 = smul.u32 32, %s10
      $region32: #{tpu_custom_call.1} parent=27 // pred_fallthru
        _
    $region28: #{tpu_custom_call.1} parent=5 // pred_fallthru
      _
    %p162 = scmp.le.s32.totalorder 1, %s10
    %p163 = scmp.lt.s32.totalorder %s10, 9
    %p164 = pnand %p162, %p163
    %p165 = pneg %p164
    // Predicated region
    $region33: #{tpu_custom_call.1} parent=5 // pred_check
      _
    $region34: #{tpu_custom_call.1} parent=5 // pred_check_branch
      %167 = sbr.rel (%p164) target = $region36
    $region35: #{tpu_custom_call.1} parent=5 // pred_region
      %s168 = ssub.s32 %s10, 1
      %s169 = smul.u32 32, %s15
      %p170 = scmp.lt.s32.totalorder %s169, 255
      %s171 = scalar_select %p170, %s169, 255
      %s172 = smul.addr %s171, 4
      %s173 = scalar_lea.vmem %s0, %s172
      %p174 = pneg %p36
      %p175 = pneg %p33
      %p176 = pneg %p57
      %p177 = pneg %p54
      %p178 = pneg %p78
      %p179 = pneg %p75
      %p180 = pneg %p99
      %p181 = pneg %p96
      %p182 = pneg %p125
      %p183 = pneg %p122
      %s184 = smul.u32 32, %s15
      %p185 = scmp.lt.s32.totalorder %s184, 255
      %s186 = scalar_select %p185, %s184, 255
      %s187 = smul.addr %s186, 4
      %s188 = scalar_lea.vmem %s4, %s187
      %s189 = smul.u32 32, %s15
      %p190 = scmp.lt.s32.totalorder %s189, 255
      %s191 = scalar_select %p190, %s189, 255
      %s192 = smul.addr %s191, 4
      %s193 = scalar_lea.vmem %s0, %s192
      %s194 = smul.u32 32, %s15
      %s195 = smul.u32 32, %s15
      %p196 = scmp.lt.s32.totalorder %s195, 255
      %s197 = scalar_select %p196, %s195, 255
      %s198 = smul.addr %s197, 4
      %s199 = scalar_lea.vmem %s4, %s198
      %s200 = smul.u32 32, %s15
      %v202 = vld [vmem:[%s193] sm:$0xf]
      %v203 = vld [vmem:[%s193 + $0x4] sm:$0xf]
      %v204 = vld [vmem:[%s193 + $0x8] sm:$0xf]
      %v205 = vld [vmem:[%s193 + $0xc] sm:$0xf]
      %v206 = vld [vmem:[%s193 + $0x10] sm:$0xf]
      %v207 = vld [vmem:[%s193 + $0x14] sm:$0xf]
      %v208 = vld [vmem:[%s193 + $0x18] sm:$0xf]
      %v209 = vld [vmem:[%s193 + $0x1c] sm:$0xf]
      %v210 = vld [vmem:[%s193 + $0x20] sm:$0xf]
      %v211 = vld [vmem:[%s193 + $0x24] sm:$0xf]
      %v212 = vld [vmem:[%s193 + $0x28] sm:$0xf]
      %v213 = vld [vmem:[%s193 + $0x2c] sm:$0xf]
      %v214 = vld [vmem:[%s193 + $0x30] sm:$0xf]
      %v215 = vld [vmem:[%s193 + $0x34] sm:$0xf]
      %v216 = vld [vmem:[%s193 + $0x38] sm:$0xf]
      %v217 = vld [vmem:[%s193 + $0x3c] sm:$0xf]
      %v218 = vld [vmem:[%s193 + $0x40] sm:$0xf]
      %v219 = vld [vmem:[%s193 + $0x44] sm:$0xf]
      %v220 = vld [vmem:[%s193 + $0x48] sm:$0xf]
      %v221 = vld [vmem:[%s193 + $0x4c] sm:$0xf]
      %v222 = vld [vmem:[%s193 + $0x50] sm:$0xf]
      %v223 = vld [vmem:[%s193 + $0x54] sm:$0xf]
      %v224 = vld [vmem:[%s193 + $0x58] sm:$0xf]
      %v225 = vld [vmem:[%s193 + $0x5c] sm:$0xf]
      %v226 = vld [vmem:[%s193 + $0x60] sm:$0xf]
      %v227 = vld [vmem:[%s193 + $0x64] sm:$0xf]
      %v228 = vld [vmem:[%s193 + $0x68] sm:$0xf]
      %v229 = vld [vmem:[%s193 + $0x6c] sm:$0xf]
      %v230 = vld [vmem:[%s193 + $0x70] sm:$0xf]
      %v231 = vld [vmem:[%s193 + $0x74] sm:$0xf]
      %v232 = vld [vmem:[%s193 + $0x78] sm:$0xf]
      %v233 = vld [vmem:[%s193 + $0x7c] sm:$0xf]
      %v234 = vld [vmem:[%s1] sm:$0xf]
      %v235 = vld [vmem:[%s1 + $0x4] sm:$0xf]
      %v268 = vunpack.c.l.b16 %v202
      %v269 = vunpack.c.l.b16 %v203
      %v270 = vunpack.c.l.b16 %v204
      %v271 = vunpack.c.l.b16 %v205
      %v272 = vunpack.c.l.b16 %v206
      %v273 = vunpack.c.l.b16 %v207
      %v274 = vunpack.c.l.b16 %v208
      %v275 = vunpack.c.l.b16 %v209
      %v276 = vunpack.c.l.b16 %v210
      %v277 = vunpack.c.l.b16 %v211
      %v278 = vunpack.c.l.b16 %v212
      %v279 = vunpack.c.l.b16 %v213
      %v280 = vunpack.c.l.b16 %v214
      %v281 = vunpack.c.l.b16 %v215
      %v282 = vunpack.c.l.b16 %v216
      %v283 = vunpack.c.l.b16 %v217
      %v284 = vunpack.c.l.b16 %v218
      %v285 = vunpack.c.l.b16 %v219
      %v286 = vunpack.c.l.b16 %v220
      %v287 = vunpack.c.l.b16 %v221
      %v288 = vunpack.c.l.b16 %v222
      %v289 = vunpack.c.l.b16 %v223
      %v290 = vunpack.c.l.b16 %v224
      %v291 = vunpack.c.l.b16 %v225
      %v292 = vunpack.c.l.b16 %v226
      %v293 = vunpack.c.l.b16 %v227
      %v294 = vunpack.c.l.b16 %v228
      %v295 = vunpack.c.l.b16 %v229
      %v296 = vunpack.c.l.b16 %v230
      %v297 = vunpack.c.l.b16 %v231
      %v298 = vunpack.c.l.b16 %v232
      %v299 = vunpack.c.l.b16 %v233
      %v300 = vpack.c.b16 %v269, %v268
      %v301 = vpack.c.b16 %v271, %v270
      %v302 = vpack.c.b16 %v273, %v272
      %v303 = vpack.c.b16 %v275, %v274
      %v304 = vpack.c.b16 %v277, %v276
      %v305 = vpack.c.b16 %v279, %v278
      %v306 = vpack.c.b16 %v281, %v280
      %v307 = vpack.c.b16 %v283, %v282
      %v308 = vpack.c.b16 %v285, %v284
      %v309 = vpack.c.b16 %v287, %v286
      %v310 = vpack.c.b16 %v289, %v288
      %v311 = vpack.c.b16 %v291, %v290
      %v312 = vpack.c.b16 %v293, %v292
      %v313 = vpack.c.b16 %v295, %v294
      %v314 = vpack.c.b16 %v297, %v296
      %v315 = vpack.c.b16 %v299, %v298
      %v318 = vunpack.c.l.b16 %v234
      %v319 = vunpack.c.l.b16 %v235
      %v320 = vpack.c.b16 %v319, %v318
      %vm322 = vcmask 130048
      %v324 = vsel %vm322, %v300, 0
      %v327 = vsel %vm322, %v301, 0
      %v330 = vsel %vm322, %v302, 0
      %v333 = vsel %vm322, %v303, 0
      %v336 = vsel %vm322, %v304, 0
      %v339 = vsel %vm322, %v305, 0
      %v342 = vsel %vm322, %v306, 0
      %v345 = vsel %vm322, %v307, 0
      %v348 = vsel %vm322, %v308, 0
      %v351 = vsel %vm322, %v309, 0
      %v354 = vsel %vm322, %v310, 0
      %v357 = vsel %vm322, %v311, 0
      %v360 = vsel %vm322, %v312, 0
      %v363 = vsel %vm322, %v313, 0
      %v366 = vsel %vm322, %v314, 0
      %v369 = vsel %vm322, %v315, 0
      %371 = vmatprep.subr.bf16.mxu0 0
      %372 = vmatpush1.bf16.msra.mxu0 0
      %373 = vmatprep.subr.bf16.mxu0 0
      %374 = vmatpush1.bf16.msra.mxu0 0
      %375 = vmatprep.subr.bf16.mxu0 0
      %376 = vmatpush1.bf16.msra.mxu0 0
      %377 = vmatprep.subr.bf16.mxu0 0
      %378 = vmatpush1.bf16.msra.mxu0 0
      %379 = vmatprep.subr.bf16.mxu0 0
      %380 = vmatpush1.bf16.msra.mxu0 0
      %381 = vmatprep.subr.bf16.mxu0 0
      %382 = vmatpush1.bf16.msra.mxu0 0
      %383 = vmatprep.subr.bf16.mxu0 0
      %384 = vmatpush1.bf16.msra.mxu0 0
      %385 = vmatprep.subr.bf16.mxu0 0
      %386 = vmatpush1.bf16.msra.mxu0 %v320
      %387 = vmatprep.subr.bf16.mxu0 0
      %388 = vmatpush2.bf16.msra.mxu0 0
      %389 = vmatprep.subr.bf16.mxu0 0
      %390 = vmatpush2.bf16.msra.mxu0 0
      %391 = vmatprep.subr.bf16.mxu0 0
      %392 = vmatpush2.bf16.msra.mxu0 0
      %393 = vmatprep.subr.bf16.mxu0 0
      %394 = vmatpush2.bf16.msra.mxu0 0
      %395 = vmatprep.subr.bf16.mxu0 0
      %396 = vmatpush2.bf16.msra.mxu0 0
      %397 = vmatprep.subr.bf16.mxu0 0
      %398 = vmatpush2.bf16.msra.mxu0 0
      %399 = vmatprep.subr.bf16.mxu0 0
      %400 = vmatpush2.bf16.msra.mxu0 0
      %401 = vmatprep.subr.bf16.mxu0 0
      %402 = vmatpush2.bf16.msra.mxu0 0
      %403 = vmatprep.mubr.bf16.mxu0 0
      %404 = vmatmul.mubr.bf16.gmra.mxu0 %v324
      %v405 = vpop.f32.mrf.mxu0
      %v406 = vadd.f32 0.0, %v405
      %v407 = vpop.f32.mrf.mxu0
      %v408 = vpop.f32.mrf.mxu0
      %v409 = vadd.f32 0.0, %v408
      %v410 = vpop.f32.mrf.mxu0
      %411 = vmatprep.mubr.bf16.mxu0 0
      %412 = vmatmul.mubr.bf16.gmra.mxu0 %v327
      %v413 = vpop.f32.mrf.mxu0
      %v414 = vadd.f32 0.0, %v413
      %v415 = vpop.f32.mrf.mxu0
      %v416 = vpop.f32.mrf.mxu0
      %v417 = vadd.f32 0.0, %v416
      %v418 = vpop.f32.mrf.mxu0
      %419 = vmatprep.mubr.bf16.mxu0 0
      %420 = vmatmul.mubr.bf16.gmra.mxu0 %v330
      %v421 = vpop.f32.mrf.mxu0
      %v422 = vadd.f32 0.0, %v421
      %v423 = vpop.f32.mrf.mxu0
      %v424 = vpop.f32.mrf.mxu0
      %v425 = vadd.f32 0.0, %v424
      %v426 = vpop.f32.mrf.mxu0
      %427 = vmatprep.mubr.bf16.mxu0 0
      %428 = vmatmul.mubr.bf16.gmra.mxu0 %v333
      %v429 = vpop.f32.mrf.mxu0
      %v430 = vadd.f32 0.0, %v429
      %v431 = vpop.f32.mrf.mxu0
      %v432 = vpop.f32.mrf.mxu0
      %v433 = vadd.f32 0.0, %v432
      %v434 = vpop.f32.mrf.mxu0
      %435 = vmatprep.mubr.bf16.mxu0 0
      %436 = vmatmul.mubr.bf16.gmra.mxu0 %v336
      %v437 = vpop.f32.mrf.mxu0
      %v438 = vadd.f32 0.0, %v437
      %v439 = vpop.f32.mrf.mxu0
      %v440 = vpop.f32.mrf.mxu0
      %v441 = vadd.f32 0.0, %v440
      %v442 = vpop.f32.mrf.mxu0
      %443 = vmatprep.mubr.bf16.mxu0 0
      %444 = vmatmul.mubr.bf16.gmra.mxu0 %v339
      %v445 = vpop.f32.mrf.mxu0
      %v446 = vadd.f32 0.0, %v445
      %v447 = vpop.f32.mrf.mxu0
      %v448 = vpop.f32.mrf.mxu0
      %v449 = vadd.f32 0.0, %v448
      %v450 = vpop.f32.mrf.mxu0
      %451 = vmatprep.mubr.bf16.mxu0 0
      %452 = vmatmul.mubr.bf16.gmra.mxu0 %v342
      %v453 = vpop.f32.mrf.mxu0
      %v454 = vadd.f32 0.0, %v453
      %v455 = vpop.f32.mrf.mxu0
      %v456 = vpop.f32.mrf.mxu0
      %v457 = vadd.f32 0.0, %v456
      %v458 = vpop.f32.mrf.mxu0
      %459 = vmatprep.mubr.bf16.mxu0 0
      %460 = vmatmul.mubr.bf16.gmra.mxu0 %v345
      %v461 = vpop.f32.mrf.mxu0
      %v462 = vadd.f32 0.0, %v461
      %v463 = vpop.f32.mrf.mxu0
      %v464 = vpop.f32.mrf.mxu0
      %v465 = vadd.f32 0.0, %v464
      %v466 = vpop.f32.mrf.mxu0
      %467 = vmatprep.mubr.bf16.mxu0 0
      %468 = vmatmul.mubr.bf16.gmra.mxu0 %v348
      %v469 = vpop.f32.mrf.mxu0
      %v470 = vadd.f32 0.0, %v469
      %v471 = vpop.f32.mrf.mxu0
      %v472 = vpop.f32.mrf.mxu0
      %v473 = vadd.f32 0.0, %v472
      %v474 = vpop.f32.mrf.mxu0
      %475 = vmatprep.mubr.bf16.mxu0 0
      %476 = vmatmul.mubr.bf16.gmra.mxu0 %v351
      %v477 = vpop.f32.mrf.mxu0
      %v478 = vadd.f32 0.0, %v477
      %v479 = vpop.f32.mrf.mxu0
      %v480 = vpop.f32.mrf.mxu0
      %v481 = vadd.f32 0.0, %v480
      %v482 = vpop.f32.mrf.mxu0
      %483 = vmatprep.mubr.bf16.mxu0 0
      %484 = vmatmul.mubr.bf16.gmra.mxu0 %v354
      %v485 = vpop.f32.mrf.mxu0
      %v486 = vadd.f32 0.0, %v485
      %v487 = vpop.f32.mrf.mxu0
      %v488 = vpop.f32.mrf.mxu0
      %v489 = vadd.f32 0.0, %v488
      %v490 = vpop.f32.mrf.mxu0
      %491 = vmatprep.mubr.bf16.mxu0 0
      %492 = vmatmul.mubr.bf16.gmra.mxu0 %v357
      %v493 = vpop.f32.mrf.mxu0
      %v494 = vadd.f32 0.0, %v493
      %v495 = vpop.f32.mrf.mxu0
      %v496 = vpop.f32.mrf.mxu0
      %v497 = vadd.f32 0.0, %v496
      %v498 = vpop.f32.mrf.mxu0
      %499 = vmatprep.mubr.bf16.mxu0 0
      %500 = vmatmul.mubr.bf16.gmra.mxu0 %v360
      %v501 = vpop.f32.mrf.mxu0
      %v502 = vadd.f32 0.0, %v501
      %v503 = vpop.f32.mrf.mxu0
      %v504 = vpop.f32.mrf.mxu0
      %v505 = vadd.f32 0.0, %v504
      %v506 = vpop.f32.mrf.mxu0
      %507 = vmatprep.mubr.bf16.mxu0 0
      %508 = vmatmul.mubr.bf16.gmra.mxu0 %v363
      %v509 = vpop.f32.mrf.mxu0
      %v510 = vadd.f32 0.0, %v509
      %v511 = vpop.f32.mrf.mxu0
      %v512 = vpop.f32.mrf.mxu0
      %v513 = vadd.f32 0.0, %v512
      %v514 = vpop.f32.mrf.mxu0
      %515 = vmatprep.mubr.bf16.mxu0 0
      %516 = vmatmul.mubr.bf16.gmra.mxu0 %v366
      %v517 = vpop.f32.mrf.mxu0
      %v518 = vadd.f32 0.0, %v517
      %v519 = vpop.f32.mrf.mxu0
      %v520 = vpop.f32.mrf.mxu0
      %v521 = vadd.f32 0.0, %v520
      %v522 = vpop.f32.mrf.mxu0
      %523 = vmatprep.mubr.bf16.mxu0 0
      %524 = vmatmul.mubr.bf16.gmra.mxu0 %v369
      %v525 = vpop.f32.mrf.mxu0
      %v526 = vadd.f32 0.0, %v525
      %v527 = vpop.f32.mrf.mxu0
      %v528 = vpop.f32.mrf.mxu0
      %v529 = vadd.f32 0.0, %v528
      %v530 = vpop.f32.mrf.mxu0
      %531 = vdwg.mxu0
      %v532 = vxor.u32 %v406, 2147483648
      %v533 = vxor.u32 %v409, 2147483648
      %v534 = vxor.u32 %v414, 2147483648
      %v535 = vxor.u32 %v417, 2147483648
      %v536 = vxor.u32 %v422, 2147483648
      %v537 = vxor.u32 %v425, 2147483648
      %v538 = vxor.u32 %v430, 2147483648
      %v539 = vxor.u32 %v433, 2147483648
      %v540 = vxor.u32 %v438, 2147483648
      %v541 = vxor.u32 %v441, 2147483648
      %v542 = vxor.u32 %v446, 2147483648
      %v543 = vxor.u32 %v449, 2147483648
      %v544 = vxor.u32 %v454, 2147483648
      %v545 = vxor.u32 %v457, 2147483648
      %v546 = vxor.u32 %v462, 2147483648
      %v547 = vxor.u32 %v465, 2147483648
      %v548 = vxor.u32 %v470, 2147483648
      %v549 = vxor.u32 %v473, 2147483648
      %v550 = vxor.u32 %v478, 2147483648
      %v551 = vxor.u32 %v481, 2147483648
      %v552 = vxor.u32 %v486, 2147483648
      %v553 = vxor.u32 %v489, 2147483648
      %v554 = vxor.u32 %v494, 2147483648
      %v555 = vxor.u32 %v497, 2147483648
      %v556 = vxor.u32 %v502, 2147483648
      %v557 = vxor.u32 %v505, 2147483648
      %v558 = vxor.u32 %v510, 2147483648
      %v559 = vxor.u32 %v513, 2147483648
      %v560 = vxor.u32 %v518, 2147483648
      %v561 = vxor.u32 %v521, 2147483648
      %v562 = vxor.u32 %v526, 2147483648
      %v563 = vxor.u32 %v529, 2147483648
      %v564 = vmul.f32 %v532, 1.442695
      %v565 = vpow.pop %v564
      %v566 = vmul.f32 %v533, 1.442695
      %v567 = vpow.pop %v566
      %v568 = vmul.f32 %v534, 1.442695
      %v569 = vpow.pop %v568
      %v570 = vmul.f32 %v535, 1.442695
      %v571 = vpow.pop %v570
      %v572 = vmul.f32 %v536, 1.442695
      %v573 = vpow.pop %v572
      %v574 = vmul.f32 %v537, 1.442695
      %v575 = vpow.pop %v574
      %v576 = vmul.f32 %v538, 1.442695
      %v577 = vpow.pop %v576
      %v578 = vmul.f32 %v539, 1.442695
      %v579 = vpow.pop %v578
      %v580 = vmul.f32 %v540, 1.442695
      %v581 = vpow.pop %v580
      %v582 = vmul.f32 %v541, 1.442695
      %v583 = vpow.pop %v582
      %v584 = vmul.f32 %v542, 1.442695
      %v585 = vpow.pop %v584
      %v586 = vmul.f32 %v543, 1.442695
      %v587 = vpow.pop %v586
      %v588 = vmul.f32 %v544, 1.442695
      %v589 = vpow.pop %v588
      %v590 = vmul.f32 %v545, 1.442695
      %v591 = vpow.pop %v590
      %v592 = vmul.f32 %v546, 1.442695
      %v593 = vpow.pop %v592
      %v594 = vmul.f32 %v547, 1.442695
      %v595 = vpow.pop %v594
      %v596 = vmul.f32 %v548, 1.442695
      %v597 = vpow.pop %v596
      %v598 = vmul.f32 %v549, 1.442695
      %v599 = vpow.pop %v598
      %v600 = vmul.f32 %v550, 1.442695
      %v601 = vpow.pop %v600
      %v602 = vmul.f32 %v551, 1.442695
      %v603 = vpow.pop %v602
      %v604 = vmul.f32 %v552, 1.442695
      %v605 = vpow.pop %v604
      %v606 = vmul.f32 %v553, 1.442695
      %v607 = vpow.pop %v606
      %v608 = vmul.f32 %v554, 1.442695
      %v609 = vpow.pop %v608
      %v610 = vmul.f32 %v555, 1.442695
      %v611 = vpow.pop %v610
      %v612 = vmul.f32 %v556, 1.442695
      %v613 = vpow.pop %v612
      %v614 = vmul.f32 %v557, 1.442695
      %v615 = vpow.pop %v614
      %v616 = vmul.f32 %v558, 1.442695
      %v617 = vpow.pop %v616
      %v618 = vmul.f32 %v559, 1.442695
      %v619 = vpow.pop %v618
      %v620 = vmul.f32 %v560, 1.442695
      %v621 = vpow.pop %v620
      %v622 = vmul.f32 %v561, 1.442695
      %v623 = vpow.pop %v622
      %v624 = vmul.f32 %v562, 1.442695
      %v625 = vpow.pop %v624
      %v626 = vmul.f32 %v563, 1.442695
      %v627 = vpow.pop %v626
      %v628 = vadd.f32 %v565, 1.0
      %v629 = vadd.f32 %v567, 1.0
      %v630 = vadd.f32 %v569, 1.0
      %v631 = vadd.f32 %v571, 1.0
      %v632 = vadd.f32 %v573, 1.0
      %v633 = vadd.f32 %v575, 1.0
      %v634 = vadd.f32 %v577, 1.0
      %v635 = vadd.f32 %v579, 1.0
      %v636 = vadd.f32 %v581, 1.0
      %v637 = vadd.f32 %v583, 1.0
      %v638 = vadd.f32 %v585, 1.0
      %v639 = vadd.f32 %v587, 1.0
      %v640 = vadd.f32 %v589, 1.0
      %v641 = vadd.f32 %v591, 1.0
      %v642 = vadd.f32 %v593, 1.0
      %v643 = vadd.f32 %v595, 1.0
      %v644 = vadd.f32 %v597, 1.0
      %v645 = vadd.f32 %v599, 1.0
      %v646 = vadd.f32 %v601, 1.0
      %v647 = vadd.f32 %v603, 1.0
      %v648 = vadd.f32 %v605, 1.0
      %v649 = vadd.f32 %v607, 1.0
      %v650 = vadd.f32 %v609, 1.0
      %v651 = vadd.f32 %v611, 1.0
      %v652 = vadd.f32 %v613, 1.0
      %v653 = vadd.f32 %v615, 1.0
      %v654 = vadd.f32 %v617, 1.0
      %v655 = vadd.f32 %v619, 1.0
      %v656 = vadd.f32 %v621, 1.0
      %v657 = vadd.f32 %v623, 1.0
      %v658 = vadd.f32 %v625, 1.0
      %v659 = vadd.f32 %v627, 1.0
      %v660 = vrcp.pop %v628
      %v661 = vmul.f32 1.0, %v660
      %v662 = vrcp.pop %v629
      %v663 = vmul.f32 1.0, %v662
      %v664 = vrcp.pop %v630
      %v665 = vmul.f32 1.0, %v664
      %v666 = vrcp.pop %v631
      %v667 = vmul.f32 1.0, %v666
      %v668 = vrcp.pop %v632
      %v669 = vmul.f32 1.0, %v668
      %v670 = vrcp.pop %v633
      %v671 = vmul.f32 1.0, %v670
      %v672 = vrcp.pop %v634
      %v673 = vmul.f32 1.0, %v672
      %v674 = vrcp.pop %v635
      %v675 = vmul.f32 1.0, %v674
      %v676 = vrcp.pop %v636
      %v677 = vmul.f32 1.0, %v676
      %v678 = vrcp.pop %v637
      %v679 = vmul.f32 1.0, %v678
      %v680 = vrcp.pop %v638
      %v681 = vmul.f32 1.0, %v680
      %v682 = vrcp.pop %v639
      %v683 = vmul.f32 1.0, %v682
      %v684 = vrcp.pop %v640
      %v685 = vmul.f32 1.0, %v684
      %v686 = vrcp.pop %v641
      %v687 = vmul.f32 1.0, %v686
      %v688 = vrcp.pop %v642
      %v689 = vmul.f32 1.0, %v688
      %v690 = vrcp.pop %v643
      %v691 = vmul.f32 1.0, %v690
      %v692 = vrcp.pop %v644
      %v693 = vmul.f32 1.0, %v692
      %v694 = vrcp.pop %v645
      %v695 = vmul.f32 1.0, %v694
      %v696 = vrcp.pop %v646
      %v697 = vmul.f32 1.0, %v696
      %v698 = vrcp.pop %v647
      %v699 = vmul.f32 1.0, %v698
      %v700 = vrcp.pop %v648
      %v701 = vmul.f32 1.0, %v700
      %v702 = vrcp.pop %v649
      %v703 = vmul.f32 1.0, %v702
      %v704 = vrcp.pop %v650
      %v705 = vmul.f32 1.0, %v704
      %v706 = vrcp.pop %v651
      %v707 = vmul.f32 1.0, %v706
      %v708 = vrcp.pop %v652
      %v709 = vmul.f32 1.0, %v708
      %v710 = vrcp.pop %v653
      %v711 = vmul.f32 1.0, %v710
      %v712 = vrcp.pop %v654
      %v713 = vmul.f32 1.0, %v712
      %v714 = vrcp.pop %v655
      %v715 = vmul.f32 1.0, %v714
      %v716 = vrcp.pop %v656
      %v717 = vmul.f32 1.0, %v716
      %v718 = vrcp.pop %v657
      %v719 = vmul.f32 1.0, %v718
      %v720 = vrcp.pop %v658
      %v721 = vmul.f32 1.0, %v720
      %v722 = vrcp.pop %v659
      %v723 = vmul.f32 1.0, %v722
      %v724 = vmul.f32 %v406, %v661
      %v725 = vmul.f32 %v409, %v663
      %v726 = vmul.f32 %v414, %v665
      %v727 = vmul.f32 %v417, %v667
      %v728 = vmul.f32 %v422, %v669
      %v729 = vmul.f32 %v425, %v671
      %v730 = vmul.f32 %v430, %v673
      %v731 = vmul.f32 %v433, %v675
      %v732 = vmul.f32 %v438, %v677
      %v733 = vmul.f32 %v441, %v679
      %v734 = vmul.f32 %v446, %v681
      %v735 = vmul.f32 %v449, %v683
      %v736 = vmul.f32 %v454, %v685
      %v737 = vmul.f32 %v457, %v687
      %v738 = vmul.f32 %v462, %v689
      %v739 = vmul.f32 %v465, %v691
      %v740 = vmul.f32 %v470, %v693
      %v741 = vmul.f32 %v473, %v695
      %v742 = vmul.f32 %v478, %v697
      %v743 = vmul.f32 %v481, %v699
      %v744 = vmul.f32 %v486, %v701
      %v745 = vmul.f32 %v489, %v703
      %v746 = vmul.f32 %v494, %v705
      %v747 = vmul.f32 %v497, %v707
      %v748 = vmul.f32 %v502, %v709
      %v749 = vmul.f32 %v505, %v711
      %v750 = vmul.f32 %v510, %v713
      %v751 = vmul.f32 %v513, %v715
      %v752 = vmul.f32 %v518, %v717
      %v753 = vmul.f32 %v521, %v719
      %v754 = vmul.f32 %v526, %v721
      %v755 = vmul.f32 %v529, %v723
      %v756 = vld [vmem:[%s2] sm:$0xf]
      %v757 = vld [vmem:[%s2 + $0x4] sm:$0xf]
      %v758 = vld [vmem:[%s2 + $0x8] sm:$0xf]
      %v759 = vld [vmem:[%s2 + $0xc] sm:$0xf]
      %v760 = vpack.c.bf16 %v725, %v724
      %v761 = vpack.c.bf16 %v727, %v726
      %v762 = vpack.c.bf16 %v729, %v728
      %v763 = vpack.c.bf16 %v731, %v730
      %v764 = vpack.c.bf16 %v733, %v732
      %v765 = vpack.c.bf16 %v735, %v734
      %v766 = vpack.c.bf16 %v737, %v736
      %v767 = vpack.c.bf16 %v739, %v738
      %v768 = vpack.c.bf16 %v741, %v740
      %v769 = vpack.c.bf16 %v743, %v742
      %v770 = vpack.c.bf16 %v745, %v744
      %v771 = vpack.c.bf16 %v747, %v746
      %v772 = vpack.c.bf16 %v749, %v748
      %v773 = vpack.c.bf16 %v751, %v750
      %v774 = vpack.c.bf16 %v753, %v752
      %v775 = vpack.c.bf16 %v755, %v754
      %v780 = vunpack.c.l.b16 %v756
      %v781 = vunpack.c.l.b16 %v757
      %v782 = vunpack.c.l.b16 %v758
      %v783 = vunpack.c.l.b16 %v759
      %v784 = vpack.c.b16 %v781, %v780
      %v785 = vpack.c.b16 %v783, %v782
      %vm788 = vcmask 261120
      %v790 = vsel %vm788, %v760, 0
      %v793 = vsel %vm788, %v761, 0
      %v796 = vsel %vm788, %v762, 0
      %v799 = vsel %vm788, %v763, 0
      %v802 = vsel %vm788, %v764, 0
      %v805 = vsel %vm788, %v765, 0
      %v808 = vsel %vm788, %v766, 0
      %v811 = vsel %vm788, %v767, 0
      %v814 = vsel %vm788, %v768, 0
      %v817 = vsel %vm788, %v769, 0
      %v820 = vsel %vm788, %v770, 0
      %v823 = vsel %vm788, %v771, 0
      %v826 = vsel %vm788, %v772, 0
      %v829 = vsel %vm788, %v773, 0
      %v832 = vsel %vm788, %v774, 0
      %v835 = vsel %vm788, %v775, 0
      %837 = vmatprep.subr.bf16.mxu0 0
      %838 = vmatpush1.bf16.msra.mxu0 0
      %839 = vmatprep.subr.bf16.mxu0 0
      %840 = vmatpush1.bf16.msra.mxu0 0
      %841 = vmatprep.subr.bf16.mxu0 0
      %842 = vmatpush1.bf16.msra.mxu0 0
      %843 = vmatprep.subr.bf16.mxu0 0
      %844 = vmatpush1.bf16.msra.mxu0 0
      %845 = vmatprep.subr.bf16.mxu0 0
      %846 = vmatpush1.bf16.msra.mxu0 0
      %847 = vmatprep.subr.bf16.mxu0 0
      %848 = vmatpush1.bf16.msra.mxu0 0
      %849 = vmatprep.subr.bf16.mxu0 0
      %850 = vmatpush1.bf16.msra.mxu0 %v785
      %851 = vmatprep.subr.bf16.mxu0 0
      %852 = vmatpush1.bf16.msra.mxu0 %v784
      %853 = vmatprep.subr.bf16.mxu0 0
      %854 = vmatpush2.bf16.msra.mxu0 0
      %855 = vmatprep.subr.bf16.mxu0 0
      %856 = vmatpush2.bf16.msra.mxu0 0
      %857 = vmatprep.subr.bf16.mxu0 0
      %858 = vmatpush2.bf16.msra.mxu0 0
      %859 = vmatprep.subr.bf16.mxu0 0
      %860 = vmatpush2.bf16.msra.mxu0 0
      %861 = vmatprep.subr.bf16.mxu0 0
      %862 = vmatpush2.bf16.msra.mxu0 0
      %863 = vmatprep.subr.bf16.mxu0 0
      %864 = vmatpush2.bf16.msra.mxu0 0
      %865 = vmatprep.subr.bf16.mxu0 0
      %866 = vmatpush2.bf16.msra.mxu0 0
      %867 = vmatprep.subr.bf16.mxu0 0
      %868 = vmatpush2.bf16.msra.mxu0 0
      %869 = vmatprep.mubr.bf16.mxu0 0
      %870 = vmatmul.mubr.bf16.gmra.mxu0 %v790
      %v871 = vpop.f32.mrf.mxu0
      %v872 = vadd.f32 0.0, %v871
      %v873 = vpop.f32.mrf.mxu0
      %v874 = vpop.f32.mrf.mxu0
      %v875 = vadd.f32 0.0, %v874
      %v876 = vpop.f32.mrf.mxu0
      %877 = vmatprep.mubr.bf16.mxu0 0
      %878 = vmatmul.mubr.bf16.gmra.mxu0 %v793
      %v879 = vpop.f32.mrf.mxu0
      %v880 = vadd.f32 0.0, %v879
      %v881 = vpop.f32.mrf.mxu0
      %v882 = vpop.f32.mrf.mxu0
      %v883 = vadd.f32 0.0, %v882
      %v884 = vpop.f32.mrf.mxu0
      %885 = vmatprep.mubr.bf16.mxu0 0
      %886 = vmatmul.mubr.bf16.gmra.mxu0 %v796
      %v887 = vpop.f32.mrf.mxu0
      %v888 = vadd.f32 0.0, %v887
      %v889 = vpop.f32.mrf.mxu0
      %v890 = vpop.f32.mrf.mxu0
      %v891 = vadd.f32 0.0, %v890
      %v892 = vpop.f32.mrf.mxu0
      %893 = vmatprep.mubr.bf16.mxu0 0
      %894 = vmatmul.mubr.bf16.gmra.mxu0 %v799
      %v895 = vpop.f32.mrf.mxu0
      %v896 = vadd.f32 0.0, %v895
      %v897 = vpop.f32.mrf.mxu0
      %v898 = vpop.f32.mrf.mxu0
      %v899 = vadd.f32 0.0, %v898
      %v900 = vpop.f32.mrf.mxu0
      %901 = vmatprep.mubr.bf16.mxu0 0
      %902 = vmatmul.mubr.bf16.gmra.mxu0 %v802
      %v903 = vpop.f32.mrf.mxu0
      %v904 = vadd.f32 0.0, %v903
      %v905 = vpop.f32.mrf.mxu0
      %v906 = vpop.f32.mrf.mxu0
      %v907 = vadd.f32 0.0, %v906
      %v908 = vpop.f32.mrf.mxu0
      %909 = vmatprep.mubr.bf16.mxu0 0
      %910 = vmatmul.mubr.bf16.gmra.mxu0 %v805
      %v911 = vpop.f32.mrf.mxu0
      %v912 = vadd.f32 0.0, %v911
      %v913 = vpop.f32.mrf.mxu0
      %v914 = vpop.f32.mrf.mxu0
      %v915 = vadd.f32 0.0, %v914
      %v916 = vpop.f32.mrf.mxu0
      %917 = vmatprep.mubr.bf16.mxu0 0
      %918 = vmatmul.mubr.bf16.gmra.mxu0 %v808
      %v919 = vpop.f32.mrf.mxu0
      %v920 = vadd.f32 0.0, %v919
      %v921 = vpop.f32.mrf.mxu0
      %v922 = vpop.f32.mrf.mxu0
      %v923 = vadd.f32 0.0, %v922
      %v924 = vpop.f32.mrf.mxu0
      %925 = vmatprep.mubr.bf16.mxu0 0
      %926 = vmatmul.mubr.bf16.gmra.mxu0 %v811
      %v927 = vpop.f32.mrf.mxu0
      %v928 = vadd.f32 0.0, %v927
      %v929 = vpop.f32.mrf.mxu0
      %v930 = vpop.f32.mrf.mxu0
      %v931 = vadd.f32 0.0, %v930
      %v932 = vpop.f32.mrf.mxu0
      %933 = vmatprep.mubr.bf16.mxu0 0
      %934 = vmatmul.mubr.bf16.gmra.mxu0 %v814
      %v935 = vpop.f32.mrf.mxu0
      %v936 = vadd.f32 0.0, %v935
      %v937 = vpop.f32.mrf.mxu0
      %v938 = vpop.f32.mrf.mxu0
      %v939 = vadd.f32 0.0, %v938
      %v940 = vpop.f32.mrf.mxu0
      %941 = vmatprep.mubr.bf16.mxu0 0
      %942 = vmatmul.mubr.bf16.gmra.mxu0 %v817
      %v943 = vpop.f32.mrf.mxu0
      %v944 = vadd.f32 0.0, %v943
      %v945 = vpop.f32.mrf.mxu0
      %v946 = vpop.f32.mrf.mxu0
      %v947 = vadd.f32 0.0, %v946
      %v948 = vpop.f32.mrf.mxu0
      %949 = vmatprep.mubr.bf16.mxu0 0
      %950 = vmatmul.mubr.bf16.gmra.mxu0 %v820
      %v951 = vpop.f32.mrf.mxu0
      %v952 = vadd.f32 0.0, %v951
      %v953 = vpop.f32.mrf.mxu0
      %v954 = vpop.f32.mrf.mxu0
      %v955 = vadd.f32 0.0, %v954
      %v956 = vpop.f32.mrf.mxu0
      %957 = vmatprep.mubr.bf16.mxu0 0
      %958 = vmatmul.mubr.bf16.gmra.mxu0 %v823
      %v959 = vpop.f32.mrf.mxu0
      %v960 = vadd.f32 0.0, %v959
      %v961 = vpop.f32.mrf.mxu0
      %v962 = vpop.f32.mrf.mxu0
      %v963 = vadd.f32 0.0, %v962
      %v964 = vpop.f32.mrf.mxu0
      %965 = vmatprep.mubr.bf16.mxu0 0
      %966 = vmatmul.mubr.bf16.gmra.mxu0 %v826
      %v967 = vpop.f32.mrf.mxu0
      %v968 = vadd.f32 0.0, %v967
      %v969 = vpop.f32.mrf.mxu0
      %v970 = vpop.f32.mrf.mxu0
      %v971 = vadd.f32 0.0, %v970
      %v972 = vpop.f32.mrf.mxu0
      %973 = vmatprep.mubr.bf16.mxu0 0
      %974 = vmatmul.mubr.bf16.gmra.mxu0 %v829
      %v975 = vpop.f32.mrf.mxu0
      %v976 = vadd.f32 0.0, %v975
      %v977 = vpop.f32.mrf.mxu0
      %v978 = vpop.f32.mrf.mxu0
      %v979 = vadd.f32 0.0, %v978
      %v980 = vpop.f32.mrf.mxu0
      %981 = vmatprep.mubr.bf16.mxu0 0
      %982 = vmatmul.mubr.bf16.gmra.mxu0 %v832
      %v983 = vpop.f32.mrf.mxu0
      %v984 = vadd.f32 0.0, %v983
      %v985 = vpop.f32.mrf.mxu0
      %v986 = vpop.f32.mrf.mxu0
      %v987 = vadd.f32 0.0, %v986
      %v988 = vpop.f32.mrf.mxu0
      %989 = vmatprep.mubr.bf16.mxu0 0
      %990 = vmatmul.mubr.bf16.gmra.mxu0 %v835
      %v991 = vpop.f32.mrf.mxu0
      %v992 = vadd.f32 0.0, %v991
      %v993 = vpop.f32.mrf.mxu0
      %v994 = vpop.f32.mrf.mxu0
      %v995 = vadd.f32 0.0, %v994
      %v996 = vpop.f32.mrf.mxu0
      %997 = vdwg.mxu0
      %v998 = vxor.u32 %v872, 2147483648
      %v999 = vxor.u32 %v875, 2147483648
      %v1000 = vxor.u32 %v880, 2147483648
      %v1001 = vxor.u32 %v883, 2147483648
      %v1002 = vxor.u32 %v888, 2147483648
      %v1003 = vxor.u32 %v891, 2147483648
      %v1004 = vxor.u32 %v896, 2147483648
      %v1005 = vxor.u32 %v899, 2147483648
      %v1006 = vxor.u32 %v904, 2147483648
      %v1007 = vxor.u32 %v907, 2147483648
      %v1008 = vxor.u32 %v912, 2147483648
      %v1009 = vxor.u32 %v915, 2147483648
      %v1010 = vxor.u32 %v920, 2147483648
      %v1011 = vxor.u32 %v923, 2147483648
      %v1012 = vxor.u32 %v928, 2147483648
      %v1013 = vxor.u32 %v931, 2147483648
      %v1014 = vxor.u32 %v936, 2147483648
      %v1015 = vxor.u32 %v939, 2147483648
      %v1016 = vxor.u32 %v944, 2147483648
      %v1017 = vxor.u32 %v947, 2147483648
      %v1018 = vxor.u32 %v952, 2147483648
      %v1019 = vxor.u32 %v955, 2147483648
      %v1020 = vxor.u32 %v960, 2147483648
      %v1021 = vxor.u32 %v963, 2147483648
      %v1022 = vxor.u32 %v968, 2147483648
      %v1023 = vxor.u32 %v971, 2147483648
      %v1024 = vxor.u32 %v976, 2147483648
      %v1025 = vxor.u32 %v979, 2147483648
      %v1026 = vxor.u32 %v984, 2147483648
      %v1027 = vxor.u32 %v987, 2147483648
      %v1028 = vxor.u32 %v992, 2147483648
      %v1029 = vxor.u32 %v995, 2147483648
      %v1030 = vmul.f32 %v998, 1.442695
      %v1031 = vpow.pop %v1030
      %v1032 = vmul.f32 %v999, 1.442695
      %v1033 = vpow.pop %v1032
      %v1034 = vmul.f32 %v1000, 1.442695
      %v1035 = vpow.pop %v1034
      %v1036 = vmul.f32 %v1001, 1.442695
      %v1037 = vpow.pop %v1036
      %v1038 = vmul.f32 %v1002, 1.442695
      %v1039 = vpow.pop %v1038
      %v1040 = vmul.f32 %v1003, 1.442695
      %v1041 = vpow.pop %v1040
      %v1042 = vmul.f32 %v1004, 1.442695
      %v1043 = vpow.pop %v1042
      %v1044 = vmul.f32 %v1005, 1.442695
      %v1045 = vpow.pop %v1044
      %v1046 = vmul.f32 %v1006, 1.442695
      %v1047 = vpow.pop %v1046
      %v1048 = vmul.f32 %v1007, 1.442695
      %v1049 = vpow.pop %v1048
      %v1050 = vmul.f32 %v1008, 1.442695
      %v1051 = vpow.pop %v1050
      %v1052 = vmul.f32 %v1009, 1.442695
      %v1053 = vpow.pop %v1052
      %v1054 = vmul.f32 %v1010, 1.442695
      %v1055 = vpow.pop %v1054
      %v1056 = vmul.f32 %v1011, 1.442695
      %v1057 = vpow.pop %v1056
      %v1058 = vmul.f32 %v1012, 1.442695
      %v1059 = vpow.pop %v1058
      %v1060 = vmul.f32 %v1013, 1.442695
      %v1061 = vpow.pop %v1060
      %v1062 = vmul.f32 %v1014, 1.442695
      %v1063 = vpow.pop %v1062
      %v1064 = vmul.f32 %v1015, 1.442695
      %v1065 = vpow.pop %v1064
      %v1066 = vmul.f32 %v1016, 1.442695
      %v1067 = vpow.pop %v1066
      %v1068 = vmul.f32 %v1017, 1.442695
      %v1069 = vpow.pop %v1068
      %v1070 = vmul.f32 %v1018, 1.442695
      %v1071 = vpow.pop %v1070
      %v1072 = vmul.f32 %v1019, 1.442695
      %v1073 = vpow.pop %v1072
      %v1074 = vmul.f32 %v1020, 1.442695
      %v1075 = vpow.pop %v1074
      %v1076 = vmul.f32 %v1021, 1.442695
      %v1077 = vpow.pop %v1076
      %v1078 = vmul.f32 %v1022, 1.442695
      %v1079 = vpow.pop %v1078
      %v1080 = vmul.f32 %v1023, 1.442695
      %v1081 = vpow.pop %v1080
      %v1082 = vmul.f32 %v1024, 1.442695
      %v1083 = vpow.pop %v1082
      %v1084 = vmul.f32 %v1025, 1.442695
      %v1085 = vpow.pop %v1084
      %v1086 = vmul.f32 %v1026, 1.442695
      %v1087 = vpow.pop %v1086
      %v1088 = vmul.f32 %v1027, 1.442695
      %v1089 = vpow.pop %v1088
      %v1090 = vmul.f32 %v1028, 1.442695
      %v1091 = vpow.pop %v1090
      %v1092 = vmul.f32 %v1029, 1.442695
      %v1093 = vpow.pop %v1092
      %v1094 = vadd.f32 %v1031, 1.0
      %v1095 = vadd.f32 %v1033, 1.0
      %v1096 = vadd.f32 %v1035, 1.0
      %v1097 = vadd.f32 %v1037, 1.0
      %v1098 = vadd.f32 %v1039, 1.0
      %v1099 = vadd.f32 %v1041, 1.0
      %v1100 = vadd.f32 %v1043, 1.0
      %v1101 = vadd.f32 %v1045, 1.0
      %v1102 = vadd.f32 %v1047, 1.0
      %v1103 = vadd.f32 %v1049, 1.0
      %v1104 = vadd.f32 %v1051, 1.0
      %v1105 = vadd.f32 %v1053, 1.0
      %v1106 = vadd.f32 %v1055, 1.0
      %v1107 = vadd.f32 %v1057, 1.0
      %v1108 = vadd.f32 %v1059, 1.0
      %v1109 = vadd.f32 %v1061, 1.0
      %v1110 = vadd.f32 %v1063, 1.0
      %v1111 = vadd.f32 %v1065, 1.0
      %v1112 = vadd.f32 %v1067, 1.0
      %v1113 = vadd.f32 %v1069, 1.0
      %v1114 = vadd.f32 %v1071, 1.0
      %v1115 = vadd.f32 %v1073, 1.0
      %v1116 = vadd.f32 %v1075, 1.0
      %v1117 = vadd.f32 %v1077, 1.0
      %v1118 = vadd.f32 %v1079, 1.0
      %v1119 = vadd.f32 %v1081, 1.0
      %v1120 = vadd.f32 %v1083, 1.0
      %v1121 = vadd.f32 %v1085, 1.0
      %v1122 = vadd.f32 %v1087, 1.0
      %v1123 = vadd.f32 %v1089, 1.0
      %v1124 = vadd.f32 %v1091, 1.0
      %v1125 = vadd.f32 %v1093, 1.0
      %v1126 = vrcp.pop %v1094
      %v1127 = vmul.f32 1.0, %v1126
      %v1128 = vrcp.pop %v1095
      %v1129 = vmul.f32 1.0, %v1128
      %v1130 = vrcp.pop %v1096
      %v1131 = vmul.f32 1.0, %v1130
      %v1132 = vrcp.pop %v1097
      %v1133 = vmul.f32 1.0, %v1132
      %v1134 = vrcp.pop %v1098
      %v1135 = vmul.f32 1.0, %v1134
      %v1136 = vrcp.pop %v1099
      %v1137 = vmul.f32 1.0, %v1136
      %v1138 = vrcp.pop %v1100
      %v1139 = vmul.f32 1.0, %v1138
      %v1140 = vrcp.pop %v1101
      %v1141 = vmul.f32 1.0, %v1140
      %v1142 = vrcp.pop %v1102
      %v1143 = vmul.f32 1.0, %v1142
      %v1144 = vrcp.pop %v1103
      %v1145 = vmul.f32 1.0, %v1144
      %v1146 = vrcp.pop %v1104
      %v1147 = vmul.f32 1.0, %v1146
      %v1148 = vrcp.pop %v1105
      %v1149 = vmul.f32 1.0, %v1148
      %v1150 = vrcp.pop %v1106
      %v1151 = vmul.f32 1.0, %v1150
      %v1152 = vrcp.pop %v1107
      %v1153 = vmul.f32 1.0, %v1152
      %v1154 = vrcp.pop %v1108
      %v1155 = vmul.f32 1.0, %v1154
      %v1156 = vrcp.pop %v1109
      %v1157 = vmul.f32 1.0, %v1156
      %v1158 = vrcp.pop %v1110
      %v1159 = vmul.f32 1.0, %v1158
      %v1160 = vrcp.pop %v1111
      %v1161 = vmul.f32 1.0, %v1160
      %v1162 = vrcp.pop %v1112
      %v1163 = vmul.f32 1.0, %v1162
      %v1164 = vrcp.pop %v1113
      %v1165 = vmul.f32 1.0, %v1164
      %v1166 = vrcp.pop %v1114
      %v1167 = vmul.f32 1.0, %v1166
      %v1168 = vrcp.pop %v1115
      %v1169 = vmul.f32 1.0, %v1168
      %v1170 = vrcp.pop %v1116
      %v1171 = vmul.f32 1.0, %v1170
      %v1172 = vrcp.pop %v1117
      %v1173 = vmul.f32 1.0, %v1172
      %v1174 = vrcp.pop %v1118
      %v1175 = vmul.f32 1.0, %v1174
      %v1176 = vrcp.pop %v1119
      %v1177 = vmul.f32 1.0, %v1176
      %v1178 = vrcp.pop %v1120
      %v1179 = vmul.f32 1.0, %v1178
      %v1180 = vrcp.pop %v1121
      %v1181 = vmul.f32 1.0, %v1180
      %v1182 = vrcp.pop %v1122
      %v1183 = vmul.f32 1.0, %v1182
      %v1184 = vrcp.pop %v1123
      %v1185 = vmul.f32 1.0, %v1184
      %v1186 = vrcp.pop %v1124
      %v1187 = vmul.f32 1.0, %v1186
      %v1188 = vrcp.pop %v1125
      %v1189 = vmul.f32 1.0, %v1188
      %v1190 = vmul.f32 %v872, %v1127
      %v1191 = vmul.f32 %v875, %v1129
      %v1192 = vmul.f32 %v880, %v1131
      %v1193 = vmul.f32 %v883, %v1133
      %v1194 = vmul.f32 %v888, %v1135
      %v1195 = vmul.f32 %v891, %v1137
      %v1196 = vmul.f32 %v896, %v1139
      %v1197 = vmul.f32 %v899, %v1141
      %v1198 = vmul.f32 %v904, %v1143
      %v1199 = vmul.f32 %v907, %v1145
      %v1200 = vmul.f32 %v912, %v1147
      %v1201 = vmul.f32 %v915, %v1149
      %v1202 = vmul.f32 %v920, %v1151
      %v1203 = vmul.f32 %v923, %v1153
      %v1204 = vmul.f32 %v928, %v1155
      %v1205 = vmul.f32 %v931, %v1157
      %v1206 = vmul.f32 %v936, %v1159
      %v1207 = vmul.f32 %v939, %v1161
      %v1208 = vmul.f32 %v944, %v1163
      %v1209 = vmul.f32 %v947, %v1165
      %v1210 = vmul.f32 %v952, %v1167
      %v1211 = vmul.f32 %v955, %v1169
      %v1212 = vmul.f32 %v960, %v1171
      %v1213 = vmul.f32 %v963, %v1173
      %v1214 = vmul.f32 %v968, %v1175
      %v1215 = vmul.f32 %v971, %v1177
      %v1216 = vmul.f32 %v976, %v1179
      %v1217 = vmul.f32 %v979, %v1181
      %v1218 = vmul.f32 %v984, %v1183
      %v1219 = vmul.f32 %v987, %v1185
      %v1220 = vmul.f32 %v992, %v1187
      %v1221 = vmul.f32 %v995, %v1189
      %v1222 = vld [vmem:[%s3] sm:$0xf]
      %v1223 = vld [vmem:[%s3 + $0x4] sm:$0xf]
      %v1224 = vld [vmem:[%s3 + $0x8] sm:$0xf]
      %v1225 = vld [vmem:[%s3 + $0xc] sm:$0xf]
      %v1226 = vpack.c.bf16 %v1191, %v1190
      %v1227 = vpack.c.bf16 %v1193, %v1192
      %v1228 = vpack.c.bf16 %v1195, %v1194
      %v1229 = vpack.c.bf16 %v1197, %v1196
      %v1230 = vpack.c.bf16 %v1199, %v1198
      %v1231 = vpack.c.bf16 %v1201, %v1200
      %v1232 = vpack.c.bf16 %v1203, %v1202
      %v1233 = vpack.c.bf16 %v1205, %v1204
      %v1234 = vpack.c.bf16 %v1207, %v1206
      %v1235 = vpack.c.bf16 %v1209, %v1208
      %v1236 = vpack.c.bf16 %v1211, %v1210
      %v1237 = vpack.c.bf16 %v1213, %v1212
      %v1238 = vpack.c.bf16 %v1215, %v1214
      %v1239 = vpack.c.bf16 %v1217, %v1216
      %v1240 = vpack.c.bf16 %v1219, %v1218
      %v1241 = vpack.c.bf16 %v1221, %v1220
      %v1246 = vunpack.c.l.b16 %v1222
      %v1247 = vunpack.c.l.b16 %v1223
      %v1248 = vunpack.c.l.b16 %v1224
      %v1249 = vunpack.c.l.b16 %v1225
      %v1250 = vpack.c.b16 %v1247, %v1246
      %v1251 = vpack.c.b16 %v1249, %v1248
      %v1255 = vsel %vm788, %v1226, 0
      %v1258 = vsel %vm788, %v1227, 0
      %v1261 = vsel %vm788, %v1228, 0
      %v1264 = vsel %vm788, %v1229, 0
      %v1267 = vsel %vm788, %v1230, 0
      %v1270 = vsel %vm788, %v1231, 0
      %v1273 = vsel %vm788, %v1232, 0
      %v1276 = vsel %vm788, %v1233, 0
      %v1279 = vsel %vm788, %v1234, 0
      %v1282 = vsel %vm788, %v1235, 0
      %v1285 = vsel %vm788, %v1236, 0
      %v1288 = vsel %vm788, %v1237, 0
      %v1291 = vsel %vm788, %v1238, 0
      %v1294 = vsel %vm788, %v1239, 0
      %v1297 = vsel %vm788, %v1240, 0
      %v1300 = vsel %vm788, %v1241, 0
      %1302 = vmatprep.subr.bf16.mxu0 0
      %1303 = vmatpush1.bf16.msra.mxu0 0
      %1304 = vmatprep.subr.bf16.mxu0 0
      %1305 = vmatpush1.bf16.msra.mxu0 0
      %1306 = vmatprep.subr.bf16.mxu0 0
      %1307 = vmatpush1.bf16.msra.mxu0 0
      %1308 = vmatprep.subr.bf16.mxu0 0
      %1309 = vmatpush1.bf16.msra.mxu0 0
      %1310 = vmatprep.subr.bf16.mxu0 0
      %1311 = vmatpush1.bf16.msra.mxu0 0
      %1312 = vmatprep.subr.bf16.mxu0 0
      %1313 = vmatpush1.bf16.msra.mxu0 0
      %1314 = vmatprep.subr.bf16.mxu0 0
      %1315 = vmatpush1.bf16.msra.mxu0 %v1251
      %1316 = vmatprep.subr.bf16.mxu0 0
      %1317 = vmatpush1.bf16.msra.mxu0 %v1250
      %1318 = vmatprep.subr.bf16.mxu0 0
      %1319 = vmatpush2.bf16.msra.mxu0 0
      %1320 = vmatprep.subr.bf16.mxu0 0
      %1321 = vmatpush2.bf16.msra.mxu0 0
      %1322 = vmatprep.subr.bf16.mxu0 0
      %1323 = vmatpush2.bf16.msra.mxu0 0
      %1324 = vmatprep.subr.bf16.mxu0 0
      %1325 = vmatpush2.bf16.msra.mxu0 0
      %1326 = vmatprep.subr.bf16.mxu0 0
      %1327 = vmatpush2.bf16.msra.mxu0 0
      %1328 = vmatprep.subr.bf16.mxu0 0
      %1329 = vmatpush2.bf16.msra.mxu0 0
      %1330 = vmatprep.subr.bf16.mxu0 0
      %1331 = vmatpush2.bf16.msra.mxu0 0
      %1332 = vmatprep.subr.bf16.mxu0 0
      %1333 = vmatpush2.bf16.msra.mxu0 0
      %1334 = vmatprep.mubr.bf16.mxu0 0
      %1335 = vmatmul.mubr.bf16.gmra.mxu0 %v1255
      %v1336 = vpop.f32.mrf.mxu0
      %v1337 = vadd.f32 0.0, %v1336
      %v1338 = vpop.f32.mrf.mxu0
      %v1339 = vpop.f32.mrf.mxu0
      %v1340 = vadd.f32 0.0, %v1339
      %v1341 = vpop.f32.mrf.mxu0
      %1342 = vmatprep.mubr.bf16.mxu0 0
      %1343 = vmatmul.mubr.bf16.gmra.mxu0 %v1258
      %v1344 = vpop.f32.mrf.mxu0
      %v1345 = vadd.f32 0.0, %v1344
      %v1346 = vpop.f32.mrf.mxu0
      %v1347 = vpop.f32.mrf.mxu0
      %v1348 = vadd.f32 0.0, %v1347
      %v1349 = vpop.f32.mrf.mxu0
      %1350 = vmatprep.mubr.bf16.mxu0 0
      %1351 = vmatmul.mubr.bf16.gmra.mxu0 %v1261
      %v1352 = vpop.f32.mrf.mxu0
      %v1353 = vadd.f32 0.0, %v1352
      %v1354 = vpop.f32.mrf.mxu0
      %v1355 = vpop.f32.mrf.mxu0
      %v1356 = vadd.f32 0.0, %v1355
      %v1357 = vpop.f32.mrf.mxu0
      %1358 = vmatprep.mubr.bf16.mxu0 0
      %1359 = vmatmul.mubr.bf16.gmra.mxu0 %v1264
      %v1360 = vpop.f32.mrf.mxu0
      %v1361 = vadd.f32 0.0, %v1360
      %v1362 = vpop.f32.mrf.mxu0
      %v1363 = vpop.f32.mrf.mxu0
      %v1364 = vadd.f32 0.0, %v1363
      %v1365 = vpop.f32.mrf.mxu0
      %1366 = vmatprep.mubr.bf16.mxu0 0
      %1367 = vmatmul.mubr.bf16.gmra.mxu0 %v1267
      %v1368 = vpop.f32.mrf.mxu0
      %v1369 = vadd.f32 0.0, %v1368
      %v1370 = vpop.f32.mrf.mxu0
      %v1371 = vpop.f32.mrf.mxu0
      %v1372 = vadd.f32 0.0, %v1371
      %v1373 = vpop.f32.mrf.mxu0
      %1374 = vmatprep.mubr.bf16.mxu0 0
      %1375 = vmatmul.mubr.bf16.gmra.mxu0 %v1270
      %v1376 = vpop.f32.mrf.mxu0
      %v1377 = vadd.f32 0.0, %v1376
      %v1378 = vpop.f32.mrf.mxu0
      %v1379 = vpop.f32.mrf.mxu0
      %v1380 = vadd.f32 0.0, %v1379
      %v1381 = vpop.f32.mrf.mxu0
      %1382 = vmatprep.mubr.bf16.mxu0 0
      %1383 = vmatmul.mubr.bf16.gmra.mxu0 %v1273
      %v1384 = vpop.f32.mrf.mxu0
      %v1385 = vadd.f32 0.0, %v1384
      %v1386 = vpop.f32.mrf.mxu0
      %v1387 = vpop.f32.mrf.mxu0
      %v1388 = vadd.f32 0.0, %v1387
      %v1389 = vpop.f32.mrf.mxu0
      %1390 = vmatprep.mubr.bf16.mxu0 0
      %1391 = vmatmul.mubr.bf16.gmra.mxu0 %v1276
      %v1392 = vpop.f32.mrf.mxu0
      %v1393 = vadd.f32 0.0, %v1392
      %v1394 = vpop.f32.mrf.mxu0
      %v1395 = vpop.f32.mrf.mxu0
      %v1396 = vadd.f32 0.0, %v1395
      %v1397 = vpop.f32.mrf.mxu0
      %1398 = vmatprep.mubr.bf16.mxu0 0
      %1399 = vmatmul.mubr.bf16.gmra.mxu0 %v1279
      %v1400 = vpop.f32.mrf.mxu0
      %v1401 = vadd.f32 0.0, %v1400
      %v1402 = vpop.f32.mrf.mxu0
      %v1403 = vpop.f32.mrf.mxu0
      %v1404 = vadd.f32 0.0, %v1403
      %v1405 = vpop.f32.mrf.mxu0
      %1406 = vmatprep.mubr.bf16.mxu0 0
      %1407 = vmatmul.mubr.bf16.gmra.mxu0 %v1282
      %v1408 = vpop.f32.mrf.mxu0
      %v1409 = vadd.f32 0.0, %v1408
      %v1410 = vpop.f32.mrf.mxu0
      %v1411 = vpop.f32.mrf.mxu0
      %v1412 = vadd.f32 0.0, %v1411
      %v1413 = vpop.f32.mrf.mxu0
      %1414 = vmatprep.mubr.bf16.mxu0 0
      %1415 = vmatmul.mubr.bf16.gmra.mxu0 %v1285
      %v1416 = vpop.f32.mrf.mxu0
      %v1417 = vadd.f32 0.0, %v1416
      %v1418 = vpop.f32.mrf.mxu0
      %v1419 = vpop.f32.mrf.mxu0
      %v1420 = vadd.f32 0.0, %v1419
      %v1421 = vpop.f32.mrf.mxu0
      %1422 = vmatprep.mubr.bf16.mxu0 0
      %1423 = vmatmul.mubr.bf16.gmra.mxu0 %v1288
      %v1424 = vpop.f32.mrf.mxu0
      %v1425 = vadd.f32 0.0, %v1424
      %v1426 = vpop.f32.mrf.mxu0
      %v1427 = vpop.f32.mrf.mxu0
      %v1428 = vadd.f32 0.0, %v1427
      %v1429 = vpop.f32.mrf.mxu0
      %1430 = vmatprep.mubr.bf16.mxu0 0
      %1431 = vmatmul.mubr.bf16.gmra.mxu0 %v1291
      %v1432 = vpop.f32.mrf.mxu0
      %v1433 = vadd.f32 0.0, %v1432
      %v1434 = vpop.f32.mrf.mxu0
      %v1435 = vpop.f32.mrf.mxu0
      %v1436 = vadd.f32 0.0, %v1435
      %v1437 = vpop.f32.mrf.mxu0
      %1438 = vmatprep.mubr.bf16.mxu0 0
      %1439 = vmatmul.mubr.bf16.gmra.mxu0 %v1294
      %v1440 = vpop.f32.mrf.mxu0
      %v1441 = vadd.f32 0.0, %v1440
      %v1442 = vpop.f32.mrf.mxu0
      %v1443 = vpop.f32.mrf.mxu0
      %v1444 = vadd.f32 0.0, %v1443
      %v1445 = vpop.f32.mrf.mxu0
      %1446 = vmatprep.mubr.bf16.mxu0 0
      %1447 = vmatmul.mubr.bf16.gmra.mxu0 %v1297
      %v1448 = vpop.f32.mrf.mxu0
      %v1449 = vadd.f32 0.0, %v1448
      %v1450 = vpop.f32.mrf.mxu0
      %v1451 = vpop.f32.mrf.mxu0
      %v1452 = vadd.f32 0.0, %v1451
      %v1453 = vpop.f32.mrf.mxu0
      %1454 = vmatprep.mubr.bf16.mxu0 0
      %1455 = vmatmul.mubr.bf16.gmra.mxu0 %v1300
      %v1456 = vpop.f32.mrf.mxu0
      %v1457 = vadd.f32 0.0, %v1456
      %v1458 = vpop.f32.mrf.mxu0
      %v1459 = vpop.f32.mrf.mxu0
      %v1460 = vadd.f32 0.0, %v1459
      %v1461 = vpop.f32.mrf.mxu0
      %1462 = vdwg.mxu0
      %v1463 = vpack.c.bf16 %v1340, %v1337
      %v1464 = vpack.c.bf16 %v1348, %v1345
      %v1465 = vpack.c.bf16 %v1356, %v1353
      %v1466 = vpack.c.bf16 %v1364, %v1361
      %v1467 = vpack.c.bf16 %v1372, %v1369
      %v1468 = vpack.c.bf16 %v1380, %v1377
      %v1469 = vpack.c.bf16 %v1388, %v1385
      %v1470 = vpack.c.bf16 %v1396, %v1393
      %v1471 = vpack.c.bf16 %v1404, %v1401
      %v1472 = vpack.c.bf16 %v1412, %v1409
      %v1473 = vpack.c.bf16 %v1420, %v1417
      %v1474 = vpack.c.bf16 %v1428, %v1425
      %v1475 = vpack.c.bf16 %v1436, %v1433
      %v1476 = vpack.c.bf16 %v1444, %v1441
      %v1477 = vpack.c.bf16 %v1452, %v1449
      %v1478 = vpack.c.bf16 %v1460, %v1457
      %v1495 = vunpack.c.l.b16 %v1463
      %v1496 = vunpack.c.h.b16 %v1463
      %v1497 = vunpack.c.l.b16 %v1464
      %v1498 = vunpack.c.h.b16 %v1464
      %v1499 = vunpack.c.l.b16 %v1465
      %v1500 = vunpack.c.h.b16 %v1465
      %v1501 = vunpack.c.l.b16 %v1466
      %v1502 = vunpack.c.h.b16 %v1466
      %v1503 = vunpack.c.l.b16 %v1467
      %v1504 = vunpack.c.h.b16 %v1467
      %v1505 = vunpack.c.l.b16 %v1468
      %v1506 = vunpack.c.h.b16 %v1468
      %v1507 = vunpack.c.l.b16 %v1469
      %v1508 = vunpack.c.h.b16 %v1469
      %v1509 = vunpack.c.l.b16 %v1470
      %v1510 = vunpack.c.h.b16 %v1470
      %v1511 = vunpack.c.l.b16 %v1471
      %v1512 = vunpack.c.h.b16 %v1471
      %v1513 = vunpack.c.l.b16 %v1472
      %v1514 = vunpack.c.h.b16 %v1472
      %v1515 = vunpack.c.l.b16 %v1473
      %v1516 = vunpack.c.h.b16 %v1473
      %v1517 = vunpack.c.l.b16 %v1474
      %v1518 = vunpack.c.h.b16 %v1474
      %v1519 = vunpack.c.l.b16 %v1475
      %v1520 = vunpack.c.h.b16 %v1475
      %v1521 = vunpack.c.l.b16 %v1476
      %v1522 = vunpack.c.h.b16 %v1476
      %v1523 = vunpack.c.l.b16 %v1477
      %v1524 = vunpack.c.h.b16 %v1477
      %v1525 = vunpack.c.l.b16 %v1478
      %v1526 = vunpack.c.h.b16 %v1478
      %v1527 = vpack.c.b16 %v1495, %v1495
      %v1528 = vpack.c.b16 %v1496, %v1496
      %v1529 = vpack.c.b16 %v1497, %v1497
      %v1530 = vpack.c.b16 %v1498, %v1498
      %v1531 = vpack.c.b16 %v1499, %v1499
      %v1532 = vpack.c.b16 %v1500, %v1500
      %v1533 = vpack.c.b16 %v1501, %v1501
      %v1534 = vpack.c.b16 %v1502, %v1502
      %v1535 = vpack.c.b16 %v1503, %v1503
      %v1536 = vpack.c.b16 %v1504, %v1504
      %v1537 = vpack.c.b16 %v1505, %v1505
      %v1538 = vpack.c.b16 %v1506, %v1506
      %v1539 = vpack.c.b16 %v1507, %v1507
      %v1540 = vpack.c.b16 %v1508, %v1508
      %v1541 = vpack.c.b16 %v1509, %v1509
      %v1542 = vpack.c.b16 %v1510, %v1510
      %v1543 = vpack.c.b16 %v1511, %v1511
      %v1544 = vpack.c.b16 %v1512, %v1512
      %v1545 = vpack.c.b16 %v1513, %v1513
      %v1546 = vpack.c.b16 %v1514, %v1514
      %v1547 = vpack.c.b16 %v1515, %v1515
      %v1548 = vpack.c.b16 %v1516, %v1516
      %v1549 = vpack.c.b16 %v1517, %v1517
      %v1550 = vpack.c.b16 %v1518, %v1518
      %v1551 = vpack.c.b16 %v1519, %v1519
      %v1552 = vpack.c.b16 %v1520, %v1520
      %v1553 = vpack.c.b16 %v1521, %v1521
      %v1554 = vpack.c.b16 %v1522, %v1522
      %v1555 = vpack.c.b16 %v1523, %v1523
      %v1556 = vpack.c.b16 %v1524, %v1524
      %v1557 = vpack.c.b16 %v1525, %v1525
      %v1558 = vpack.c.b16 %v1526, %v1526
      %vm1591 = vcmask 60416
      %1592 = vst.msk [vmem:[%s199] sm:$0xf] %vm1591, %v1527
      %1593 = vst.msk [vmem:[%s199 + $0x4] sm:$0xf] %vm1591, %v1528
      %1594 = vst.msk [vmem:[%s199 + $0x8] sm:$0xf] %vm1591, %v1529
      %1595 = vst.msk [vmem:[%s199 + $0xc] sm:$0xf] %vm1591, %v1530
      %1596 = vst.msk [vmem:[%s199 + $0x10] sm:$0xf] %vm1591, %v1531
      %1597 = vst.msk [vmem:[%s199 + $0x14] sm:$0xf] %vm1591, %v1532
      %1598 = vst.msk [vmem:[%s199 + $0x18] sm:$0xf] %vm1591, %v1533
      %1599 = vst.msk [vmem:[%s199 + $0x1c] sm:$0xf] %vm1591, %v1534
      %1600 = vst.msk [vmem:[%s199 + $0x20] sm:$0xf] %vm1591, %v1535
      %1601 = vst.msk [vmem:[%s199 + $0x24] sm:$0xf] %vm1591, %v1536
      %1602 = vst.msk [vmem:[%s199 + $0x28] sm:$0xf] %vm1591, %v1537
      %1603 = vst.msk [vmem:[%s199 + $0x2c] sm:$0xf] %vm1591, %v1538
      %1604 = vst.msk [vmem:[%s199 + $0x30] sm:$0xf] %vm1591, %v1539
      %1605 = vst.msk [vmem:[%s199 + $0x34] sm:$0xf] %vm1591, %v1540
      %1606 = vst.msk [vmem:[%s199 + $0x38] sm:$0xf] %vm1591, %v1541
      %1607 = vst.msk [vmem:[%s199 + $0x3c] sm:$0xf] %vm1591, %v1542
      %1608 = vst.msk [vmem:[%s199 + $0x40] sm:$0xf] %vm1591, %v1543
      %1609 = vst.msk [vmem:[%s199 + $0x44] sm:$0xf] %vm1591, %v1544
      %1610 = vst.msk [vmem:[%s199 + $0x48] sm:$0xf] %vm1591, %v1545
      %1611 = vst.msk [vmem:[%s199 + $0x4c] sm:$0xf] %vm1591, %v1546
      %1612 = vst.msk [vmem:[%s199 + $0x50] sm:$0xf] %vm1591, %v1547
      %1613 = vst.msk [vmem:[%s199 + $0x54] sm:$0xf] %vm1591, %v1548
      %1614 = vst.msk [vmem:[%s199 + $0x58] sm:$0xf] %vm1591, %v1549
      %1615 = vst.msk [vmem:[%s199 + $0x5c] sm:$0xf] %vm1591, %v1550
      %1616 = vst.msk [vmem:[%s199 + $0x60] sm:$0xf] %vm1591, %v1551
      %1617 = vst.msk [vmem:[%s199 + $0x64] sm:$0xf] %vm1591, %v1552
      %1618 = vst.msk [vmem:[%s199 + $0x68] sm:$0xf] %vm1591, %v1553
      %1619 = vst.msk [vmem:[%s199 + $0x6c] sm:$0xf] %vm1591, %v1554
      %1620 = vst.msk [vmem:[%s199 + $0x70] sm:$0xf] %vm1591, %v1555
      %1621 = vst.msk [vmem:[%s199 + $0x74] sm:$0xf] %vm1591, %v1556
      %1622 = vst.msk [vmem:[%s199 + $0x78] sm:$0xf] %vm1591, %v1557
      %1623 = vst.msk [vmem:[%s199 + $0x7c] sm:$0xf] %vm1591, %v1558
      %s1624 = smul.u32 32, %s15
      %p1625 = scmp.lt.s32.totalorder %s1624, 255
      %s1626 = scalar_select %p1625, %s1624, 255
      %s1627 = smul.addr %s1626, 4
      %s1628 = scalar_lea.vmem %s4, %s1627
      // Predicated region
      $region37: #{tpu_custom_call.1} parent=35 // pred_check
        %p1629 = pneg %p122
      $region38: #{tpu_custom_call.1} parent=35 // pred_check_branch
        %1631 = sbr.rel (%p1629) target = $region40
      $region39: #{tpu_custom_call.1} parent=35 // pred_region
        %s1632 = smul.u32 32, %s15
      $region40: #{tpu_custom_call.1} parent=35 // pred_fallthru
        _
    $region36: #{tpu_custom_call.1} parent=5 // pred_fallthru
      _
    %p1633 = scmp.le.s32.totalorder 2, %s10
    // Predicated region
    $region41: #{tpu_custom_call.1} parent=5 // pred_check
      %p1634 = pneg %p1633
    $region42: #{tpu_custom_call.1} parent=5 // pred_check_branch
      %1636 = sbr.rel (%p1634) target = $region44
    $region43: #{tpu_custom_call.1} parent=5 // pred_region
      %s1637 = ssub.s32 %s10, 2
      // Predicated region
      $region45: #{tpu_custom_call.1} parent=43 // pred_check
        %p1638 = pneg %p128
      $region46: #{tpu_custom_call.1} parent=43 // pred_check_branch
        %1640 = sbr.rel (%p1638) target = $region48
      $region47: #{tpu_custom_call.1} parent=43 // pred_region
        %s1641 = smul.u32 32, %s16
        %p1642 = scmp.lt.s32.totalorder %s1641, 255
        %s1643 = scalar_select %p1642, %s1641, 255
        %s1644 = smul.addr %s1643, 4
        %s1645 = scalar_lea.vmem %s4, %s1644
      $region48: #{tpu_custom_call.1} parent=43 // pred_fallthru
        _
    $region44: #{tpu_custom_call.1} parent=5 // pred_fallthru
      _
  $region6: #{tpu_custom_call.1} parent=0 // loop_footer
    %s14 = sadd.s32 1, %s10
  $region7: #{tpu_custom_call.1} parent=0 // loop_footer_branch
    %9 = sbr.rel target = $region3
  $region8: #{tpu_custom_call.1} parent=0 // loop_exit
    _

</llo_original>
